<compile_context>
chip_gen: v6e
topology: v6e:2x2x1
jax: 0.10.0
libtpu: 0.0.40
codegen_flags: <defaults>
</compile_context>

<pallas_src>
import functools

import numpy as np
import jax
import jax.numpy as jnp
from jax import lax
from jax.experimental import pallas as pl
from jax.experimental.pallas import tpu as pltpu

CH = 128          # conv channels fixed by the module definition
UPC = 8 * 8 * 9   # 576 upmask channels


# ----------------------------------------------------------------------------
# shared helpers: boundary masks + 9-tap 3x3 conv on a flattened (H*W, C) image
# ----------------------------------------------------------------------------
def _tap_masks(H, W, lanes):
    """Validity masks (True = keep) per non-center tap offset (oy, ox)."""
    M = H * W
    r = lax.broadcasted_iota(jnp.int32, (M, lanes), 0)
    c = r % W
    top = r >= W                   # neighbour row y-1 exists
    bot = r < (H - 1) * W          # neighbour row y+1 exists
    left = c != 0                  # neighbour col x-1 exists
    right = c != (W - 1)           # neighbour col x+1 exists
    row_m = {-1: top, 0: None, 1: bot}
    col_m = {-1: left, 0: None, 1: right}
    masks = {}
    for oy in (-1, 0, 1):
        for ox in (-1, 0, 1):
            if oy == 0 and ox == 0:
                continue
            m = row_m[oy]
            if col_m[ox] is not None:
                m = col_m[ox] if m is None else jnp.logical_and(m, col_m[ox])
            masks[(oy, ox)] = m
    return masks


def _conv3x3_flat(xf, w_ref, H, W, masks):
    """SAME 3x3 conv of flattened image xf (H*W, Cin) with w_ref (9, Cin, Cout).

    Each tap: pltpu.roll (XLU) + boundary mask (VPU) + one MXU matmul; no
    shifted patches are materialised through vector load/store slots.
    """
    M = H * W
    # center tap first: no roll, no mask, also initialises the accumulator
    acc = jnp.dot(xf, w_ref[4], preferred_element_type=jnp.float32)
    for tap in range(9):
        if tap == 4:
            continue
        oy, ox = tap // 3 - 1, tap % 3 - 1
        shift = (-(oy * W + ox)) % M
        shifted = pltpu.roll(xf, shift, axis=0)
        shifted = jnp.where(masks[(oy, ox)], shifted, 0.0)
        acc = acc + jnp.dot(shifted, w_ref[tap],
                            preferred_element_type=jnp.float32)
    return acc


# ----------------------------------------------------------------------------
# Kernel A: conv1 + ReLU + scatter_mean (segment mean over `num`), fused
# ----------------------------------------------------------------------------
def _conv1_scatter_kernel(order_ref, seg_ref, cnt_ref,
                          x_ref, w_ref, b_ref, o_ref, *, H, W, C):
    n = pl.program_id(1)
    nmax = pl.num_programs(1) - 1
    M = H * W

    xf = x_ref[0, 0].reshape(M, C)
    masks = _tap_masks(H, W, C)
    h = jnp.maximum(_conv3x3_flat(xf, w_ref, H, W, masks) + b_ref[...], 0.0)
    hb = h.reshape(o_ref.shape)

    seg = seg_ref[n]
    prev = seg_ref[jnp.maximum(n - 1, 0)]
    nxt = seg_ref[jnp.minimum(n + 1, nmax)]
    is_first = jnp.logical_or(n == 0, prev != seg)
    is_last = jnp.logical_or(n == nmax, nxt != seg)

    @pl.when(is_first)
    def _():
        o_ref[...] = hb                         # init group accumulator

    @pl.when(jnp.logical_not(is_first))
    def _():
        o_ref[...] = o_ref[...] + hb            # accumulate (block is resident)

    @pl.when(is_last)
    def _():
        o_ref[...] = o_ref[...] * (1.0 / cnt_ref[n].astype(jnp.float32))


def conv1_scatter_mean(x, w1, b1, order, seg, cnt, num_unique):
    # x: (B, num, H, W, C); frames are visited in group-sorted order `order`.
    B, num, H, W, C = x.shape
    kern = functools.partial(_conv1_scatter_kernel, H=H, W=W, C=C)
    return pl.pallas_call(
        kern,
        out_shape=jax.ShapeDtypeStruct((B, num_unique, H, W, C), jnp.float32),
        grid_spec=pltpu.PrefetchScalarGridSpec(
            num_scalar_prefetch=3,
            grid=(B, num),
            in_specs=[
                pl.BlockSpec((1, 1, H, W, C),
                             lambda b, n, od, sg, ct: (b, od[n], 0, 0, 0)),
                pl.BlockSpec((9, C, C), lambda b, n, od, sg, ct: (0, 0, 0)),
                pl.BlockSpec((1, C), lambda b, n, od, sg, ct: (0, 0)),
            ],
            out_specs=pl.BlockSpec((1, 1, H, W, C),
                                   lambda b, n, od, sg, ct: (b, sg[n], 0, 0, 0)),
        ),
        compiler_params=pltpu.CompilerParams(
            dimension_semantics=("parallel", "arbitrary")),
    )(order, seg, cnt, x, w1.reshape(9, C, C), b1.reshape(1, C))


# ----------------------------------------------------------------------------
# Kernel B: conv2 + ReLU + eta head (3x3 -> softplus -> *0.01) + upmask (1x1)
# ----------------------------------------------------------------------------
def _conv2_heads_kernel(x_ref, w2_ref, b2_ref, we_ref, be_ref, wu_ref, bu_ref,
                        eta_ref, up_ref, *, H, W, C):
    M = H * W
    xf = x_ref[0].reshape(M, C)
    masks = _tap_masks(H, W, C)
    h3 = jnp.maximum(_conv3x3_flat(xf, w2_ref, H, W, masks) + b2_ref[...], 0.0)

    # --- eta head: T[:, tap] = <h3[r, :], we[tap, :]> (one MXU matmul, 9 useful
    # columns), then 9 shifted single-column adds + softplus.  Only channel 0
    # worth of data is ever written back to HBM.
    T = jnp.dot(h3, we_ref[...], preferred_element_type=jnp.float32)
    masks1 = _tap_masks(H, W, 1)
    eta = T[:, 4:5]
    for tap in range(9):
        if tap == 4:
            continue
        oy, ox = tap // 3 - 1, tap % 3 - 1
        shift = (-(oy * W + ox)) % M
        col = pltpu.roll(T[:, tap:tap + 1], shift, axis=0)
        eta = eta + jnp.where(masks1[(oy, ox)], col, 0.0)
    eta = eta + be_ref[...]
    # torch.nn.Softplus(beta=1, threshold=20), GradientClip is identity in fwd
    eta = jnp.where(eta > 20.0, eta, jnp.log1p(jnp.exp(eta))) * 0.01
    eta_ref[...] = eta.reshape(eta_ref.shape)

    # --- upmask head: (HW,128) x (128,576) matmul straight from VMEM h3
    up = jnp.dot(h3, wu_ref[...], preferred_element_type=jnp.float32) + bu_ref[...]
    up_ref[...] = up.reshape(up_ref.shape)


def conv2_heads(x, w2, b2, we, be, wu, bu):
    # x: (N, H, W, C); returns eta (N, H*W, 1) and upmask (N, H, W, 576)
    N, H, W, C = x.shape
    M = H * W
    upc = wu.shape[-1]
    # pack the 9 per-tap eta channel vectors as the first 9 columns of a
    # (C, 128) matrix so the whole 3x3 eta conv needs a single MXU matmul.
    wep = jnp.pad(we.reshape(9, C).T, ((0, 0), (0, 128 - 9)))
    kern = functools.partial(_conv2_heads_kernel, H=H, W=W, C=C)
    return pl.pallas_call(
        kern,
        out_shape=(jax.ShapeDtypeStruct((N, M, 1), jnp.float32),
                   jax.ShapeDtypeStruct((N, H, W, upc), jnp.float32)),
        grid_spec=pltpu.PrefetchScalarGridSpec(
            num_scalar_prefetch=0,
            grid=(N,),
            in_specs=[
                pl.BlockSpec((1, H, W, C), lambda n: (n, 0, 0, 0)),
                pl.BlockSpec((9, C, C), lambda n: (0, 0, 0)),
                pl.BlockSpec((1, C), lambda n: (0, 0)),
                pl.BlockSpec((C, 128), lambda n: (0, 0)),
                pl.BlockSpec((1, 1), lambda n: (0, 0)),
                pl.BlockSpec((C, upc), lambda n: (0, 0)),
                pl.BlockSpec((1, upc), lambda n: (0, 0)),
            ],
            out_specs=[
                pl.BlockSpec((1, M, 1), lambda n: (n, 0, 0)),
                pl.BlockSpec((1, H, W, upc), lambda n: (n, 0, 0, 0)),
            ],
        ),
        compiler_params=pltpu.CompilerParams(
            dimension_semantics=("parallel",),
            vmem_limit_bytes=48 * 1024 * 1024),
    )(x, w2.reshape(9, C, C), b2.reshape(1, C), wep, be.reshape(1, 1),
      wu, bu.reshape(1, upc))


# ----------------------------------------------------------------------------
# Parameters (deterministic synthetic init — shapes from GraphAgg.__init__)
# ----------------------------------------------------------------------------
def init_params(key):
    ks = jax.random.split(key, 8)
    s = 0.05
    return dict(
        w1=s * jax.random.normal(ks[0], (3, 3, CH, CH), jnp.float32),
        b1=s * jax.random.normal(ks[1], (CH,), jnp.float32),
        w2=s * jax.random.normal(ks[2], (3, 3, CH, CH), jnp.float32),
        b2=s * jax.random.normal(ks[3], (CH,), jnp.float32),
        we=s * jax.random.normal(ks[4], (3, 3, CH, 1), jnp.float32),
        be=s * jax.random.normal(ks[5], (1,), jnp.float32),
        wu=s * jax.random.normal(ks[6], (CH, UPC), jnp.float32),
        bu=s * jax.random.normal(ks[7], (UPC,), jnp.float32),
    )


# ----------------------------------------------------------------------------
# GraphAgg.forward
# ----------------------------------------------------------------------------
def graph_agg_forward(net, ii, params):
    batch, num, ch, ht, wd = net.shape
    assert ch == CH
    assert (ht * wd) % 8 == 0, "H*W must be a multiple of 8 for the TPU layout"

    # torch.unique(sorted=True, return_inverse=True) has data-dependent output
    # shape -> the tiny integer tables are built on the host (structural
    # constraint: the wrapper cannot be jitted over a traced `ii`).
    ii_np = np.asarray(ii)
    _, ix_np = np.unique(ii_np, return_inverse=True)
    num_unique = int(ix_np.max()) + 1
    counts_np = np.bincount(ix_np, minlength=num_unique)
    order_np = np.argsort(ix_np, kind="stable")   # frames grouped by segment
    seg_np = ix_np[order_np]                      # sorted segment id per step
    cnt_np = counts_np[seg_np]                    # segment size per step

    order = jnp.asarray(order_np, jnp.int32)
    seg = jnp.asarray(seg_np, jnp.int32)
    cnt = jnp.asarray(cnt_np, jnp.int32)

    # NCHW -> NHWC (channels on the 128-wide lane axis)
    x = jnp.transpose(net, (0, 1, 3, 4, 2))

    h2 = conv1_scatter_mean(x, params["w1"], params["b1"],
                            order, seg, cnt, num_unique)
    h2 = h2.reshape(batch * num_unique, ht, wd, CH)

    eta, up = conv2_heads(h2, params["w2"], params["b2"],
                          params["we"], params["be"],
                          params["wu"], params["bu"])

    eta_out = eta.reshape(batch, num_unique, ht, wd)
    up_out = up.transpose(0, 3, 1, 2).reshape(batch, num_unique, UPC, ht, wd)
    return eta_out, up_out


# ----------------------------------------------------------------------------
# Pure-JAX reference (for correctness check only)
# ----------------------------------------------------------------------------
def ref_forward(net, ii, params):
    batch, num, ch, ht, wd = net.shape
    _, ix_np = np.unique(np.asarray(ii), return_inverse=True)
    nu = int(ix_np.max()) + 1
    counts = jnp.asarray(np.bincount(ix_np, minlength=nu), jnp.float32)
    ix = jnp.asarray(ix_np, jnp.int32)

    def conv(xx, w, b):
        y = lax.conv_general_dilated(xx, w, (1, 1), "SAME",
                                     dimension_numbers=("NHWC", "HWIO", "NHWC"))
        return y + b.reshape(1, 1, 1, -1)

    x = net.reshape(batch * num, ch, ht, wd).transpose(0, 2, 3, 1)
    h1 = jnp.maximum(conv(x, params["w1"], params["b1"]), 0.0)
    h1 = h1.reshape(batch, num, ht, wd, ch)
    sums = jnp.zeros((batch, nu, ht, wd, ch), jnp.float32).at[:, ix].add(h1)
    h2 = (sums / counts[None, :, None, None, None]).reshape(batch * nu, ht, wd, ch)
    h3 = jnp.maximum(conv(h2, params["w2"], params["b2"]), 0.0)
    e = conv(h3, params["we"], params["be"])
    e = jnp.where(e > 20.0, e, jnp.log1p(jnp.exp(e))) * 0.01
    u = conv(h3, params["wu"].reshape(1, 1, CH, UPC), params["bu"])
    return (e[..., 0].reshape(batch, nu, ht, wd),
            u.transpose(0, 3, 1, 2).reshape(batch, nu, UPC, ht, wd))


if __name__ == "__main__":
    key = jax.random.PRNGKey(0)
    kp, kn = jax.random.split(key)
    params = init_params(kp)

    batch, num, ht, wd = 2, 5, 8, 8
    net = 0.1 * jax.random.normal(kn, (batch, num, CH, ht, wd), jnp.float32)
    ii = jnp.array([3, 1, 3, 0, 1], jnp.int32)   # -> 3 unique groups

    eta, upmask = graph_agg_forward(net, ii, params)
    jax.block_until_ready((eta, upmask))

    eta_ref, up_ref = ref_forward(net, ii, params)
    assert eta.shape == eta_ref.shape, (eta.shape, eta_ref.shape)
    assert upmask.shape == up_ref.shape, (upmask.shape, up_ref.shape)
    np.testing.assert_allclose(np.asarray(eta), np.asarray(eta_ref),
                               rtol=1e-4, atol=1e-4)
    np.testing.assert_allclose(np.asarray(upmask), np.asarray(up_ref),
                               rtol=1e-4, atol=1e-4)
    print("KERNEL_OK")
</pallas_src>

<mosaic_0001>
module attributes {stable_mosaic.version = 11 : i64} {
  func.func @_conv1_scatter_kernel(%arg0: i32, %arg1: i32, %arg2: memref<5xi32, #tpu.memory_space<smem>>, %arg3: memref<5xi32, #tpu.memory_space<smem>>, %arg4: memref<5xi32, #tpu.memory_space<smem>>, %arg5: memref<1x1x8x8x128xf32, #tpu.memory_space<vmem>>, %arg6: memref<9x128x128xf32, #tpu.memory_space<vmem>>, %arg7: memref<1x128xf32, #tpu.memory_space<vmem>>, %arg8: memref<1x1x8x8x128xf32, #tpu.memory_space<vmem>>) attributes {dimension_semantics = [#tpu.dimension_semantics<parallel>, #tpu.dimension_semantics<arbitrary>], iteration_bounds = array<i64: 2, 5>, scalar_prefetch = 3 : i64, scratch_operands = 0 : i64, tpu.core_type = #tpu.core_type<tc>, window_params = [{transform_indices = @transform_0, window_bounds = array<i64: 1, 1, 8, 8, 128>}, {pipeline_mode = #tpu.pipeline_mode<synchronous>, transform_indices = @transform_1, window_bounds = array<i64: 9, 128, 128>}, {pipeline_mode = #tpu.pipeline_mode<synchronous>, transform_indices = @transform_2, window_bounds = array<i64: 1, 128>}, {transform_indices = @transform_3, window_bounds = array<i64: 1, 1, 8, 8, 128>}]} {
    %c0 = arith.constant 0 : index
    %c0_0 = arith.constant 0 : index
    %c0_1 = arith.constant 0 : index
    %c0_2 = arith.constant 0 : index
    %c0_3 = arith.constant 0 : index
    %0 = vector.load %arg5[%c0, %c0_0, %c0_1, %c0_2, %c0_3] : memref<1x1x8x8x128xf32, #tpu.memory_space<vmem>>, vector<1x1x8x8x128xf32>
    %1 = vector.shape_cast %0 : vector<1x1x8x8x128xf32> to vector<8x8x128xf32>
    %2 = vector.shape_cast %1 : vector<8x8x128xf32> to vector<64x128xf32>
    %3 = tpu.iota {dimensions = array<i32: 0>} : vector<64x128xi32>
    %c8_i32 = arith.constant 8 : i32
    %c0_i32 = arith.constant 0 : i32
    %4 = arith.cmpi eq, %c8_i32, %c0_i32 : i32
    %c1_i32 = arith.constant 1 : i32
    %5 = arith.select %4, %c1_i32, %c8_i32 : i32
    %6 = vector.broadcast %5 : i32 to vector<64x128xi32>
    %7 = arith.remsi %3, %6 : vector<64x128xi32>
    %c0_i32_4 = arith.constant 0 : i32
    %8 = vector.broadcast %c0_i32_4 : i32 to vector<64x128xi32>
    %9 = arith.cmpi ne, %7, %8 : vector<64x128xi32>
    %c0_i32_5 = arith.constant 0 : i32
    %10 = vector.broadcast %c0_i32_5 : i32 to vector<64x128xi32>
    %11 = arith.cmpi slt, %7, %10 : vector<64x128xi32>
    %c0_i32_6 = arith.constant 0 : i32
    %12 = arith.cmpi slt, %5, %c0_i32_6 : i32
    %13 = vector.broadcast %12 : i1 to vector<64x128xi1>
    %14 = vector.broadcast %13 : vector<64x128xi1> to vector<64x128xi1>
    %15 = arith.xori %11, %14 : vector<64x128xi1>
    %16 = arith.andi %15, %9 : vector<64x128xi1>
    %17 = vector.broadcast %5 : i32 to vector<64x128xi32>
    %18 = arith.addi %7, %17 : vector<64x128xi32>
    %19 = arith.select %16, %18, %7 : vector<64x128xi1>, vector<64x128xi32>
    %c8_i32_7 = arith.constant 8 : i32
    %20 = vector.broadcast %c8_i32_7 : i32 to vector<64x128xi32>
    %21 = arith.cmpi sge, %3, %20 : vector<64x128xi32>
    %c56_i32 = arith.constant 56 : i32
    %22 = vector.broadcast %c56_i32 : i32 to vector<64x128xi32>
    %23 = arith.cmpi slt, %3, %22 : vector<64x128xi32>
    %c0_i32_8 = arith.constant 0 : i32
    %24 = vector.broadcast %c0_i32_8 : i32 to vector<64x128xi32>
    %25 = arith.cmpi ne, %19, %24 : vector<64x128xi32>
    %c7_i32 = arith.constant 7 : i32
    %26 = vector.broadcast %c7_i32 : i32 to vector<64x128xi32>
    %27 = arith.cmpi ne, %19, %26 : vector<64x128xi32>
    %28 = arith.andi %21, %25 : vector<64x128xi1>
    %29 = arith.andi %21, %27 : vector<64x128xi1>
    %30 = arith.andi %23, %25 : vector<64x128xi1>
    %31 = arith.andi %23, %27 : vector<64x128xi1>
    %c4 = arith.constant 4 : index
    %c0_9 = arith.constant 0 : index
    %c0_10 = arith.constant 0 : index
    %32 = vector.load %arg6[%c4, %c0_9, %c0_10] : memref<9x128x128xf32, #tpu.memory_space<vmem>>, vector<1x128x128xf32>
    %33 = vector.shape_cast %32 : vector<1x128x128xf32> to vector<128x128xf32>
    %cst = arith.constant dense<0.000000e+00> : vector<64x128xf32>
    %34 = tpu.matmul %2, %33, %cst {dimension_numbers = #tpu.dot_dimension_numbers<[1], [0], [0], [1], [0, 0, 1, 1], [], []>} : vector<64x128xf32>, vector<128x128xf32>, vector<64x128xf32> -> vector<64x128xf32>
    %c9_i32 = arith.constant 9 : i32
    %35 = tpu.dynamic_rotate %2 by %c9_i32 dim 0 : vector<64x128xf32>, i32 -> vector<64x128xf32>
    %cst_11 = arith.constant 0.000000e+00 : f32
    %36 = vector.broadcast %cst_11 : f32 to vector<64x128xf32>
    %37 = arith.select %28, %35, %36 : vector<64x128xi1>, vector<64x128xf32>
    %c0_12 = arith.constant 0 : index
    %c0_13 = arith.constant 0 : index
    %c0_14 = arith.constant 0 : index
    %38 = vector.load %arg6[%c0_12, %c0_13, %c0_14] : memref<9x128x128xf32, #tpu.memory_space<vmem>>, vector<1x128x128xf32>
    %39 = vector.shape_cast %38 : vector<1x128x128xf32> to vector<128x128xf32>
    %cst_15 = arith.constant dense<0.000000e+00> : vector<64x128xf32>
    %40 = tpu.matmul %37, %39, %cst_15 {dimension_numbers = #tpu.dot_dimension_numbers<[1], [0], [0], [1], [0, 0, 1, 1], [], []>} : vector<64x128xf32>, vector<128x128xf32>, vector<64x128xf32> -> vector<64x128xf32>
    %41 = arith.addf %34, %40 : vector<64x128xf32>
    %c8_i32_16 = arith.constant 8 : i32
    %42 = tpu.dynamic_rotate %2 by %c8_i32_16 dim 0 : vector<64x128xf32>, i32 -> vector<64x128xf32>
    %cst_17 = arith.constant 0.000000e+00 : f32
    %43 = vector.broadcast %cst_17 : f32 to vector<64x128xf32>
    %44 = arith.select %21, %42, %43 : vector<64x128xi1>, vector<64x128xf32>
    %c1 = arith.constant 1 : index
    %c0_18 = arith.constant 0 : index
    %c0_19 = arith.constant 0 : index
    %45 = vector.load %arg6[%c1, %c0_18, %c0_19] : memref<9x128x128xf32, #tpu.memory_space<vmem>>, vector<1x128x128xf32>
    %46 = vector.shape_cast %45 : vector<1x128x128xf32> to vector<128x128xf32>
    %cst_20 = arith.constant dense<0.000000e+00> : vector<64x128xf32>
    %47 = tpu.matmul %44, %46, %cst_20 {dimension_numbers = #tpu.dot_dimension_numbers<[1], [0], [0], [1], [0, 0, 1, 1], [], []>} : vector<64x128xf32>, vector<128x128xf32>, vector<64x128xf32> -> vector<64x128xf32>
    %48 = arith.addf %41, %47 : vector<64x128xf32>
    %c7_i32_21 = arith.constant 7 : i32
    %49 = tpu.dynamic_rotate %2 by %c7_i32_21 dim 0 : vector<64x128xf32>, i32 -> vector<64x128xf32>
    %cst_22 = arith.constant 0.000000e+00 : f32
    %50 = vector.broadcast %cst_22 : f32 to vector<64x128xf32>
    %51 = arith.select %29, %49, %50 : vector<64x128xi1>, vector<64x128xf32>
    %c2 = arith.constant 2 : index
    %c0_23 = arith.constant 0 : index
    %c0_24 = arith.constant 0 : index
    %52 = vector.load %arg6[%c2, %c0_23, %c0_24] : memref<9x128x128xf32, #tpu.memory_space<vmem>>, vector<1x128x128xf32>
    %53 = vector.shape_cast %52 : vector<1x128x128xf32> to vector<128x128xf32>
    %cst_25 = arith.constant dense<0.000000e+00> : vector<64x128xf32>
    %54 = tpu.matmul %51, %53, %cst_25 {dimension_numbers = #tpu.dot_dimension_numbers<[1], [0], [0], [1], [0, 0, 1, 1], [], []>} : vector<64x128xf32>, vector<128x128xf32>, vector<64x128xf32> -> vector<64x128xf32>
    %55 = arith.addf %48, %54 : vector<64x128xf32>
    %c1_i32_26 = arith.constant 1 : i32
    %56 = tpu.dynamic_rotate %2 by %c1_i32_26 dim 0 : vector<64x128xf32>, i32 -> vector<64x128xf32>
    %cst_27 = arith.constant 0.000000e+00 : f32
    %57 = vector.broadcast %cst_27 : f32 to vector<64x128xf32>
    %58 = arith.select %25, %56, %57 : vector<64x128xi1>, vector<64x128xf32>
    %c3 = arith.constant 3 : index
    %c0_28 = arith.constant 0 : index
    %c0_29 = arith.constant 0 : index
    %59 = vector.load %arg6[%c3, %c0_28, %c0_29] : memref<9x128x128xf32, #tpu.memory_space<vmem>>, vector<1x128x128xf32>
    %60 = vector.shape_cast %59 : vector<1x128x128xf32> to vector<128x128xf32>
    %cst_30 = arith.constant dense<0.000000e+00> : vector<64x128xf32>
    %61 = tpu.matmul %58, %60, %cst_30 {dimension_numbers = #tpu.dot_dimension_numbers<[1], [0], [0], [1], [0, 0, 1, 1], [], []>} : vector<64x128xf32>, vector<128x128xf32>, vector<64x128xf32> -> vector<64x128xf32>
    %62 = arith.addf %55, %61 : vector<64x128xf32>
    %c63_i32 = arith.constant 63 : i32
    %63 = tpu.dynamic_rotate %2 by %c63_i32 dim 0 : vector<64x128xf32>, i32 -> vector<64x128xf32>
    %cst_31 = arith.constant 0.000000e+00 : f32
    %64 = vector.broadcast %cst_31 : f32 to vector<64x128xf32>
    %65 = arith.select %27, %63, %64 : vector<64x128xi1>, vector<64x128xf32>
    %c5 = arith.constant 5 : index
    %c0_32 = arith.constant 0 : index
    %c0_33 = arith.constant 0 : index
    %66 = vector.load %arg6[%c5, %c0_32, %c0_33] : memref<9x128x128xf32, #tpu.memory_space<vmem>>, vector<1x128x128xf32>
    %67 = vector.shape_cast %66 : vector<1x128x128xf32> to vector<128x128xf32>
    %cst_34 = arith.constant dense<0.000000e+00> : vector<64x128xf32>
    %68 = tpu.matmul %65, %67, %cst_34 {dimension_numbers = #tpu.dot_dimension_numbers<[1], [0], [0], [1], [0, 0, 1, 1], [], []>} : vector<64x128xf32>, vector<128x128xf32>, vector<64x128xf32> -> vector<64x128xf32>
    %69 = arith.addf %62, %68 : vector<64x128xf32>
    %c57_i32 = arith.constant 57 : i32
    %70 = tpu.dynamic_rotate %2 by %c57_i32 dim 0 : vector<64x128xf32>, i32 -> vector<64x128xf32>
    %cst_35 = arith.constant 0.000000e+00 : f32
    %71 = vector.broadcast %cst_35 : f32 to vector<64x128xf32>
    %72 = arith.select %30, %70, %71 : vector<64x128xi1>, vector<64x128xf32>
    %c6 = arith.constant 6 : index
    %c0_36 = arith.constant 0 : index
    %c0_37 = arith.constant 0 : index
    %73 = vector.load %arg6[%c6, %c0_36, %c0_37] : memref<9x128x128xf32, #tpu.memory_space<vmem>>, vector<1x128x128xf32>
    %74 = vector.shape_cast %73 : vector<1x128x128xf32> to vector<128x128xf32>
    %cst_38 = arith.constant dense<0.000000e+00> : vector<64x128xf32>
    %75 = tpu.matmul %72, %74, %cst_38 {dimension_numbers = #tpu.dot_dimension_numbers<[1], [0], [0], [1], [0, 0, 1, 1], [], []>} : vector<64x128xf32>, vector<128x128xf32>, vector<64x128xf32> -> vector<64x128xf32>
    %76 = arith.addf %69, %75 : vector<64x128xf32>
    %c56_i32_39 = arith.constant 56 : i32
    %77 = tpu.dynamic_rotate %2 by %c56_i32_39 dim 0 : vector<64x128xf32>, i32 -> vector<64x128xf32>
    %cst_40 = arith.constant 0.000000e+00 : f32
    %78 = vector.broadcast %cst_40 : f32 to vector<64x128xf32>
    %79 = arith.select %23, %77, %78 : vector<64x128xi1>, vector<64x128xf32>
    %c7 = arith.constant 7 : index
    %c0_41 = arith.constant 0 : index
    %c0_42 = arith.constant 0 : index
    %80 = vector.load %arg6[%c7, %c0_41, %c0_42] : memref<9x128x128xf32, #tpu.memory_space<vmem>>, vector<1x128x128xf32>
    %81 = vector.shape_cast %80 : vector<1x128x128xf32> to vector<128x128xf32>
    %cst_43 = arith.constant dense<0.000000e+00> : vector<64x128xf32>
    %82 = tpu.matmul %79, %81, %cst_43 {dimension_numbers = #tpu.dot_dimension_numbers<[1], [0], [0], [1], [0, 0, 1, 1], [], []>} : vector<64x128xf32>, vector<128x128xf32>, vector<64x128xf32> -> vector<64x128xf32>
    %83 = arith.addf %76, %82 : vector<64x128xf32>
    %c55_i32 = arith.constant 55 : i32
    %84 = tpu.dynamic_rotate %2 by %c55_i32 dim 0 : vector<64x128xf32>, i32 -> vector<64x128xf32>
    %cst_44 = arith.constant 0.000000e+00 : f32
    %85 = vector.broadcast %cst_44 : f32 to vector<64x128xf32>
    %86 = arith.select %31, %84, %85 : vector<64x128xi1>, vector<64x128xf32>
    %c8 = arith.constant 8 : index
    %c0_45 = arith.constant 0 : index
    %c0_46 = arith.constant 0 : index
    %87 = vector.load %arg6[%c8, %c0_45, %c0_46] : memref<9x128x128xf32, #tpu.memory_space<vmem>>, vector<1x128x128xf32>
    %88 = vector.shape_cast %87 : vector<1x128x128xf32> to vector<128x128xf32>
    %cst_47 = arith.constant dense<0.000000e+00> : vector<64x128xf32>
    %89 = tpu.matmul %86, %88, %cst_47 {dimension_numbers = #tpu.dot_dimension_numbers<[1], [0], [0], [1], [0, 0, 1, 1], [], []>} : vector<64x128xf32>, vector<128x128xf32>, vector<64x128xf32> -> vector<64x128xf32>
    %90 = arith.addf %83, %89 : vector<64x128xf32>
    %c0_48 = arith.constant 0 : index
    %c0_49 = arith.constant 0 : index
    %91 = vector.load %arg7[%c0_48, %c0_49] : memref<1x128xf32, #tpu.memory_space<vmem>>, vector<1x128xf32>
    %92 = vector.broadcast %91 : vector<1x128xf32> to vector<64x128xf32>
    %93 = arith.addf %90, %92 : vector<64x128xf32>
    %cst_50 = arith.constant 0.000000e+00 : f32
    %94 = vector.broadcast %cst_50 : f32 to vector<64x128xf32>
    %95 = arith.maximumf %93, %94 : vector<64x128xf32>
    %96 = vector.shape_cast %95 : vector<64x128xf32> to vector<1x1x8x8x128xf32>
    %97 = arith.index_cast %arg1 : i32 to index
    %98 = memref.load %arg3[%97] : memref<5xi32, #tpu.memory_space<smem>>
    %c1_i32_51 = arith.constant 1 : i32
    %99 = arith.subi %arg1, %c1_i32_51 : i32
    %c0_i32_52 = arith.constant 0 : i32
    %100 = arith.maxsi %99, %c0_i32_52 : i32
    %101 = arith.index_cast %100 : i32 to index
    %102 = memref.load %arg3[%101] : memref<5xi32, #tpu.memory_space<smem>>
    %c1_i32_53 = arith.constant 1 : i32
    %103 = arith.addi %arg1, %c1_i32_53 : i32
    %c4_i32 = arith.constant 4 : i32
    %104 = arith.minsi %103, %c4_i32 : i32
    %105 = arith.index_cast %104 : i32 to index
    %106 = memref.load %arg3[%105] : memref<5xi32, #tpu.memory_space<smem>>
    %c0_i32_54 = arith.constant 0 : i32
    %107 = arith.cmpi eq, %arg1, %c0_i32_54 : i32
    %108 = arith.cmpi ne, %102, %98 : i32
    %109 = arith.ori %107, %108 : i1
    %c4_i32_55 = arith.constant 4 : i32
    %110 = arith.cmpi eq, %arg1, %c4_i32_55 : i32
    %111 = arith.cmpi ne, %106, %98 : i32
    %112 = arith.ori %110, %111 : i1
    %113 = arith.extui %109 : i1 to i32
    %c0_i32_56 = arith.constant 0 : i32
    %114 = arith.cmpi ne, %113, %c0_i32_56 : i32
    scf.if %114 {
      %c0_59 = arith.constant 0 : index
      %c0_60 = arith.constant 0 : index
      %c0_61 = arith.constant 0 : index
      %c0_62 = arith.constant 0 : index
      %c0_63 = arith.constant 0 : index
      %120 = vector.load %arg8[%c0_59, %c0_60, %c0_61, %c0_62, %c0_63] : memref<1x1x8x8x128xf32, #tpu.memory_space<vmem>>, vector<1x1x8x8x128xf32>
      tpu.vector_store %arg8[%c0_59, %c0_60, %c0_61, %c0_62, %c0_63], %96 {strides = array<i32>} : memref<1x1x8x8x128xf32, #tpu.memory_space<vmem>>, vector<1x1x8x8x128xf32>,
    } else {
    }
    %true = arith.constant true
    %115 = arith.xori %109, %true : i1
    %116 = arith.extui %115 : i1 to i32
    %c0_i32_57 = arith.constant 0 : i32
    %117 = arith.cmpi ne, %116, %c0_i32_57 : i32
    scf.if %117 {
      %c0_59 = arith.constant 0 : index
      %c0_60 = arith.constant 0 : index
      %c0_61 = arith.constant 0 : index
      %c0_62 = arith.constant 0 : index
      %c0_63 = arith.constant 0 : index
      %120 = vector.load %arg8[%c0_59, %c0_60, %c0_61, %c0_62, %c0_63] : memref<1x1x8x8x128xf32, #tpu.memory_space<vmem>>, vector<1x1x8x8x128xf32>
      %121 = arith.addf %120, %96 : vector<1x1x8x8x128xf32>
      %c0_64 = arith.constant 0 : index
      %c0_65 = arith.constant 0 : index
      %c0_66 = arith.constant 0 : index
      %c0_67 = arith.constant 0 : index
      %c0_68 = arith.constant 0 : index
      %122 = vector.load %arg8[%c0_64, %c0_65, %c0_66, %c0_67, %c0_68] : memref<1x1x8x8x128xf32, #tpu.memory_space<vmem>>, vector<1x1x8x8x128xf32>
      tpu.vector_store %arg8[%c0_64, %c0_65, %c0_66, %c0_67, %c0_68], %121 {strides = array<i32>} : memref<1x1x8x8x128xf32, #tpu.memory_space<vmem>>, vector<1x1x8x8x128xf32>,
    } else {
    }
    %118 = arith.extui %112 : i1 to i32
    %c0_i32_58 = arith.constant 0 : i32
    %119 = arith.cmpi ne, %118, %c0_i32_58 : i32
    scf.if %119 {
      %c0_59 = arith.constant 0 : index
      %c0_60 = arith.constant 0 : index
      %c0_61 = arith.constant 0 : index
      %c0_62 = arith.constant 0 : index
      %c0_63 = arith.constant 0 : index
      %120 = vector.load %arg8[%c0_59, %c0_60, %c0_61, %c0_62, %c0_63] : memref<1x1x8x8x128xf32, #tpu.memory_space<vmem>>, vector<1x1x8x8x128xf32>
      %121 = arith.index_cast %arg1 : i32 to index
      %122 = memref.load %arg4[%121] : memref<5xi32, #tpu.memory_space<smem>>
      %123 = arith.sitofp %122 : i32 to f32
      %cst_64 = arith.constant 1.000000e+00 : f32
      %124 = arith.divf %cst_64, %123 : f32
      %125 = vector.broadcast %124 : f32 to vector<1x1x8x8x128xf32>
      %126 = arith.mulf %120, %125 : vector<1x1x8x8x128xf32>
      %c0_65 = arith.constant 0 : index
      %c0_66 = arith.constant 0 : index
      %c0_67 = arith.constant 0 : index
      %c0_68 = arith.constant 0 : index
      %c0_69 = arith.constant 0 : index
      %127 = vector.load %arg8[%c0_65, %c0_66, %c0_67, %c0_68, %c0_69] : memref<1x1x8x8x128xf32, #tpu.memory_space<vmem>>, vector<1x1x8x8x128xf32>
      tpu.vector_store %arg8[%c0_65, %c0_66, %c0_67, %c0_68, %c0_69], %126 {strides = array<i32>} : memref<1x1x8x8x128xf32, #tpu.memory_space<vmem>>, vector<1x1x8x8x128xf32>,
    } else {
    }
    return
  }
  func.func @transform_0(%arg0: i32, %arg1: i32, %arg2: memref<5xi32, #tpu.memory_space<smem>>, %arg3: memref<5xi32, #tpu.memory_space<smem>>, %arg4: memref<5xi32, #tpu.memory_space<smem>>) -> (i32, i32, i32, i32, i32) {
    %0 = arith.index_cast %arg1 : i32 to index
    %1 = memref.load %arg2[%0] : memref<5xi32, #tpu.memory_space<smem>>
    %c0_i32 = arith.constant 0 : i32
    %c0_i32_0 = arith.constant 0 : i32
    %c0_i32_1 = arith.constant 0 : i32
    %c0_i32_2 = arith.constant 0 : i32
    return %arg0, %1, %c0_i32, %c0_i32_0, %c0_i32_1 : i32, i32, i32, i32, i32
  }
  func.func @transform_1(%arg0: i32, %arg1: i32, %arg2: memref<5xi32, #tpu.memory_space<smem>>, %arg3: memref<5xi32, #tpu.memory_space<smem>>, %arg4: memref<5xi32, #tpu.memory_space<smem>>) -> (i32, i32, i32) {
    %c0_i32 = arith.constant 0 : i32
    %c0_i32_0 = arith.constant 0 : i32
    %c0_i32_1 = arith.constant 0 : i32
    %c0_i32_2 = arith.constant 0 : i32
    return %c0_i32, %c0_i32_0, %c0_i32_1 : i32, i32, i32
  }
  func.func @transform_2(%arg0: i32, %arg1: i32, %arg2: memref<5xi32, #tpu.memory_space<smem>>, %arg3: memref<5xi32, #tpu.memory_space<smem>>, %arg4: memref<5xi32, #tpu.memory_space<smem>>) -> (i32, i32) {
    %c0_i32 = arith.constant 0 : i32
    %c0_i32_0 = arith.constant 0 : i32
    %c0_i32_1 = arith.constant 0 : i32
    return %c0_i32, %c0_i32_0 : i32, i32
  }
  func.func @transform_3(%arg0: i32, %arg1: i32, %arg2: memref<5xi32, #tpu.memory_space<smem>>, %arg3: memref<5xi32, #tpu.memory_space<smem>>, %arg4: memref<5xi32, #tpu.memory_space<smem>>) -> (i32, i32, i32, i32, i32) {
    %0 = arith.index_cast %arg1 : i32 to index
    %1 = memref.load %arg3[%0] : memref<5xi32, #tpu.memory_space<smem>>
    %c0_i32 = arith.constant 0 : i32
    %c0_i32_0 = arith.constant 0 : i32
    %c0_i32_1 = arith.constant 0 : i32
    %c0_i32_2 = arith.constant 0 : i32
    return %arg0, %1, %c0_i32, %c0_i32_0, %c0_i32_1 : i32, i32, i32, i32, i32
  }
}

</mosaic_0001>

<llo_original>
// kernel: tpu_custom_call.1
$region0: #{tpu_custom_call.1}
  #allocation0 [shape = 'u32[]', space=smem, size = 0x4, offset = 0x4, fixed_abs, tag = 'smem constant byte address 0x4 - core index']
  #allocation1 [shape = 'u32[144,128]{1,0:T(1,128)}', space=vmem, size = 0x12000, scoped, tag = 'internal scratch']
  #allocation2 [shape = 's32[1]{0}', space=sflag, size = 0x4, scoped, tag = 'scoped memory for tpu_custom_call.1']
  #allocation3 [shape = 'u8[512]{0}', space=smem, size = 0x200, scoped, tag = 'prefetched SMEM operand 0']
  #allocation4 [shape = 'u8[512]{0}', space=smem, size = 0x200, scoped, tag = 'prefetched SMEM operand 1']
  #allocation5 [shape = 'u8[512]{0}', space=smem, size = 0x200, scoped, tag = 'prefetched SMEM operand 2']
  %s0 = inlined_call_operand.hbm [shape: s32[5], index: 0, kind: input, shape index: {}]
  %s1 = inlined_call_operand.vmem [shape: s32[5], index: 1, kind: input, shape index: {}]
  %s2 = inlined_call_operand.vmem [shape: s32[5], index: 2, kind: input, shape index: {}]
  %s3 = inlined_call_operand.hbm [shape: f32[2,5,8,8,128], index: 3, kind: input, shape index: {}]
  %s4 = inlined_call_operand.hbm [shape: f32[9,128,128], index: 4, kind: input, shape index: {}]
  %s5 = inlined_call_operand.vmem [shape: f32[1,128], index: 5, kind: input, shape index: {}]
  %s6 = inlined_call_operand.hbm [shape: f32[2,3,8,8,128], index: 6, kind: output, shape index: {}]
  %s7 = sld [smem:[#allocation0]]
  $region65: #{tpu_custom_call.1} parent=0
    _
  %s9 = ssub.s32 1, %s7
  %s10 = scalar_select 0, %s9, %s7
  %12 = dma.hbm_to_smem %s0, 16, [#allocation3], [#allocation2]
  %s13 = sshll.u32 %s1, 4
  %s14 = int_to_ptr.vmem [resolvable:$true] %s13
  %16 = dma.vmem_to_smem %s14, 16, [#allocation4], [#allocation2]
  %s17 = sshll.u32 %s2, 4
  %s18 = int_to_ptr.vmem [resolvable:$true] %s17
  %20 = dma.vmem_to_smem %s18, 16, [#allocation5], [#allocation2]
  %21 = dma.done [#allocation2], 48
  %22 = sfence
  $region1: #{tpu_custom_call.1} parent=0
    #allocation6 [shape = 'u8[65536]{0}', space=vmem, size = 0x10000, scoped, tag = 'input window, operand 3']
    #allocation7 [shape = 's32[2]{0}', space=sflag, size = 0x8, scoped, tag = 'scoped memory for tpu_custom_call.1']
    #allocation8 [shape = 's32[2]{0}', space=sflag, size = 0x8, scoped, tag = 'scoped memory for tpu_custom_call.1']
    #allocation9 [shape = 'u8[589824]{0}', space=vmem, size = 0x90000, scoped, tag = 'input window, operand 4, single buffered']
    #allocation10 [shape = 's32[1]{0}', space=sflag, size = 0x4, scoped, tag = 'scoped memory for tpu_custom_call.1']
    #allocation11 [shape = 'u8[65536]{0}', space=vmem, size = 0x10000, scoped, tag = 'output window, operand 0']
    %23 = vsyncpa [#allocation7], 0
    %s24 = scalar_lea.sflag [#allocation7], 1
    %25 = vsyncpa %s24, 0
    %26 = vsyncpa [#allocation10], 0
    %27 = vsyncpa [#allocation8], 0
    %s28 = scalar_lea.sflag [#allocation8], 1
    %29 = vsyncpa %s28, 0
    loop: start=0, step=1, limit=12
    $region2: #{tpu_custom_call.1} parent=1 // loop_pre_header
      _
    $region3: #{tpu_custom_call.1} parent=1 // loop_header
      %s31 = sphi 0, %s35
      %p32 = scmp.ge.s32.totalorder %s31, 12
      %s38 = sphi 0, %s50
      %s39 = sphi 0, %s46
      %s40 = sphi 0, %s38
      %s41 = sphi 0, %s39
      %s42 = sphi 0, %s40
      %s43 = sphi 0, %s41
      %s57 = sphi 0, %s59
      %s60 = sphi 0, %s57
      %s61 = sphi 0, %s60
      %s77 = sphi 0, %s61
      %s81 = sphi 0, %s81
      %s83 = sphi 0, %s81
      %s84 = sphi 0, %s83
      %s98 = sphi 0, %s84
      %s102 = sphi 0, %s102
      %s104 = sphi 0, %s102
      %s105 = sphi 0, %s104
      %s119 = sphi 0, %s105
      %s129 = sphi 0, %s131
      %s132 = sphi 0, %s129
      %s133 = sphi 0, %s132
      %s149 = sphi 0, %s133
    $region4: #{tpu_custom_call.1} parent=1 // loop_header_branch
      %34 = sbr.rel (%p32) target = $region8
    $region5: #{tpu_custom_call.1} parent=1 // loop_body
      %s36 = ssub.s32 %s31, 1
      %s37 = ssub.s32 %s31, 2
      %s44 = sadd.s32 1, %s39
      %p45 = scmp.ge.s32.totalorder %s44, 5
      %s46 = scalar_select %p45, 0, %s44
      %s47 = sadd.s32 1, %s38
      %s48 = scalar_select %p45, %s47, %s38
      %p49 = scmp.ge.s32.totalorder %s48, 2
      %s50 = scalar_select %p49, 0, %s48
      %s51 = sld [smem:[#allocation3 + %s39]]
      %s52 = sld [smem:[#allocation3 + %s46]]
      %s53 = ssub.s32 %s38, %s50
      %s54 = ssub.s32 %s51, %s52
      %s55 = sor.u32 %s53, %s54
      %p56 = scmp.eq.s32.totalorder %s55, 0
      %s58 = sadd.s32 %s57, 1
      %s59 = scalar_select %p56, %s57, %s58
      %p62 = pneg %p56
      %p63 = scmp.eq.s32.totalorder %s31, 9
      %p64 = por %p62, %p63
      %p65 = scmp.ne.s32.totalorder %s57, %s60
      %p66 = scmp.eq.s32.totalorder %s31, 0
      %p67 = por %p65, %p66
      %p68 = scmp.ne.s32.totalorder %s57, %s60
      %p69 = scmp.eq.s32.totalorder %s36, 9
      %p70 = por %p68, %p69
      %p71 = scmp.ne.s32.totalorder %s60, %s61
      %p72 = scmp.eq.s32.totalorder %s36, 0
      %p73 = por %p71, %p72
      %p74 = scmp.ne.s32.totalorder %s60, %s61
      %p75 = scmp.eq.s32.totalorder %s37, 9
      %p76 = por %p74, %p75
      %p78 = scmp.ne.s32.totalorder %s61, %s77
      %p79 = scmp.eq.s32.totalorder %s37, 0
      %p80 = por %p78, %p79
      %s82 = sadd.s32 %s81, 1
      %p85 = scmp.eq.s32.totalorder %s31, 9
      %p86 = scmp.ne.s32.totalorder %s81, %s83
      %p87 = scmp.eq.s32.totalorder %s31, 0
      %p88 = por %p86, %p87
      %p89 = scmp.ne.s32.totalorder %s81, %s83
      %p90 = scmp.eq.s32.totalorder %s36, 9
      %p91 = por %p89, %p90
      %p92 = scmp.ne.s32.totalorder %s83, %s84
      %p93 = scmp.eq.s32.totalorder %s36, 0
      %p94 = por %p92, %p93
      %p95 = scmp.ne.s32.totalorder %s83, %s84
      %p96 = scmp.eq.s32.totalorder %s37, 9
      %p97 = por %p95, %p96
      %p99 = scmp.ne.s32.totalorder %s84, %s98
      %p100 = scmp.eq.s32.totalorder %s37, 0
      %p101 = por %p99, %p100
      %s103 = sadd.s32 %s102, 1
      %p106 = scmp.eq.s32.totalorder %s31, 9
      %p107 = scmp.ne.s32.totalorder %s102, %s104
      %p108 = scmp.eq.s32.totalorder %s31, 0
      %p109 = por %p107, %p108
      %p110 = scmp.ne.s32.totalorder %s102, %s104
      %p111 = scmp.eq.s32.totalorder %s36, 9
      %p112 = por %p110, %p111
      %p113 = scmp.ne.s32.totalorder %s104, %s105
      %p114 = scmp.eq.s32.totalorder %s36, 0
      %p115 = por %p113, %p114
      %p116 = scmp.ne.s32.totalorder %s104, %s105
      %p117 = scmp.eq.s32.totalorder %s37, 9
      %p118 = por %p116, %p117
      %p120 = scmp.ne.s32.totalorder %s105, %s119
      %p121 = scmp.eq.s32.totalorder %s37, 0
      %p122 = por %p120, %p121
      %s123 = sld [smem:[#allocation4 + %s39]]
      %s124 = sld [smem:[#allocation4 + %s46]]
      %s125 = ssub.s32 %s38, %s50
      %s126 = ssub.s32 %s123, %s124
      %s127 = sor.u32 %s125, %s126
      %p128 = scmp.eq.s32.totalorder %s127, 0
      %s130 = sadd.s32 %s129, 1
      %s131 = scalar_select %p128, %s129, %s130
      %p134 = pneg %p128
      %p135 = scmp.eq.s32.totalorder %s31, 9
      %p136 = por %p134, %p135
      %p137 = scmp.ne.s32.totalorder %s129, %s132
      %p138 = scmp.eq.s32.totalorder %s31, 0
      %p139 = por %p137, %p138
      %p140 = scmp.ne.s32.totalorder %s129, %s132
      %p141 = scmp.eq.s32.totalorder %s36, 9
      %p142 = por %p140, %p141
      %p143 = scmp.ne.s32.totalorder %s132, %s133
      %p144 = scmp.eq.s32.totalorder %s36, 0
      %p145 = por %p143, %p144
      %p146 = scmp.ne.s32.totalorder %s132, %s133
      %p147 = scmp.eq.s32.totalorder %s37, 9
      %p148 = por %p146, %p147
      %p150 = scmp.ne.s32.totalorder %s133, %s149
      %p151 = scmp.eq.s32.totalorder %s37, 0
      %p152 = por %p150, %p151
      %p153 = scmp.le.s32.totalorder 1, %s31
      %p154 = scmp.lt.s32.totalorder %s31, 11
      %p155 = pnand %p153, %p154
      %p156 = pneg %p155
      // Predicated region
      $region9: #{tpu_custom_call.1} parent=5 // pred_check
        _
      $region10: #{tpu_custom_call.1} parent=5 // pred_check_branch
        %158 = sbr.rel (%p155) target = $region12
      $region11: #{tpu_custom_call.1} parent=5 // pred_region
        %s159 = ssub.s32 %s31, 1
        // Predicated region
        $region13: #{tpu_custom_call.1} parent=11 // pred_check
          %p160 = pneg %p94
        $region14: #{tpu_custom_call.1} parent=11 // pred_check_branch
          %162 = sbr.rel (%p160) target = $region16
        $region15: #{tpu_custom_call.1} parent=11 // pred_region
          %s164 = ssub.s32 18432, 18432
          %165 = vsyncadd [#allocation10], %s164
          %s166 = sshll.u32 [#allocation9], 4
          %s167 = int_to_ptr.vmem [resolvable:$true] %s166
          %172 = dma.hbm_to_vmem [thread:$0]  %s4, 18432, %s167, [#allocation10], 128, 128, 8
        $region16: #{tpu_custom_call.1} parent=11 // pred_fallthru
          _
        // Predicated region
        $region17: #{tpu_custom_call.1} parent=11 // pred_check
          %p173 = pneg %p115
        $region18: #{tpu_custom_call.1} parent=11 // pred_check_branch
          %175 = sbr.rel (%p173) target = $region20
        $region19: #{tpu_custom_call.1} parent=11 // pred_region
          _
        $region20: #{tpu_custom_call.1} parent=11 // pred_fallthru
          _
      $region12: #{tpu_custom_call.1} parent=5 // pred_fallthru
        _
      %p176 = scmp.lt.s32.totalorder %s31, 10
      // Predicated region
      $region21: #{tpu_custom_call.1} parent=5 // pred_check
        %p177 = pneg %p176
      $region22: #{tpu_custom_call.1} parent=5 // pred_check_branch
        %179 = sbr.rel (%p177) target = $region24
      $region23: #{tpu_custom_call.1} parent=5 // pred_region
        // Predicated region
        $region25: #{tpu_custom_call.1} parent=23 // pred_check
          %p180 = pneg %p67
        $region26: #{tpu_custom_call.1} parent=23 // pred_check_branch
          %182 = sbr.rel (%p180) target = $region28
        $region27: #{tpu_custom_call.1} parent=23 // pred_region
          %s183 = sand.u32 %s57, 1
          %s184 = scalar_lea.sflag [#allocation7], %s183
          %s185 = sand.u32 %s57, 1
          %s186 = smul.addr %s185, 64
          %s187 = scalar_lea.vmem [#allocation6], %s186
          %s188 = sld [smem:[#allocation3 + %s39]]
          %s190 = ssub.s32 1024, 1024
          %191 = vsyncadd %s184, %s190
          %s192 = smul.addr %s188, 8
          %s193 = smul.addr %s38, 40
          %s194 = sadd.s32 %s192, %s193
          %s195 = smul.addr %s194, 128
          %s196 = scalar_lea.hbm %s3, %s195
          %s197 = sshll.u32 %s187, 4
          %s198 = int_to_ptr.vmem [resolvable:$true] %s197
          %203 = dma.hbm_to_vmem [thread:$0]  %s196, 1024, %s198, %s184, 128, 128, 8
        $region28: #{tpu_custom_call.1} parent=23 // pred_fallthru
          _
      $region24: #{tpu_custom_call.1} parent=5 // pred_fallthru
        _
      %p204 = scmp.le.s32.totalorder 1, %s31
      %p205 = scmp.lt.s32.totalorder %s31, 11
      %p206 = pnand %p204, %p205
      %p207 = pneg %p206
      // Predicated region
      $region29: #{tpu_custom_call.1} parent=5 // pred_check
        _
      $region30: #{tpu_custom_call.1} parent=5 // pred_check_branch
        %209 = sbr.rel (%p206) target = $region32
      $region31: #{tpu_custom_call.1} parent=5 // pred_region
        %s210 = ssub.s32 %s31, 1
        %s211 = sand.u32 %s60, 1
        %s212 = scalar_lea.sflag [#allocation7], %s211
        %s213 = sand.u32 %s60, 1
        %s214 = smul.addr %s213, 64
        %s215 = scalar_lea.vmem [#allocation6], %s214
        // Predicated region
        $region33: #{tpu_custom_call.1} parent=31 // pred_check
          %p216 = pneg %p73
        $region34: #{tpu_custom_call.1} parent=31 // pred_check_branch
          %218 = sbr.rel (%p216) target = $region36
        $region35: #{tpu_custom_call.1} parent=31 // pred_region
          %219 = dma.done %s212, 1024
        $region36: #{tpu_custom_call.1} parent=31 // pred_fallthru
          _
        // Predicated region
        $region37: #{tpu_custom_call.1} parent=31 // pred_check
          %p220 = pneg %p94
        $region38: #{tpu_custom_call.1} parent=31 // pred_check_branch
          %222 = sbr.rel (%p220) target = $region40
        $region39: #{tpu_custom_call.1} parent=31 // pred_region
          %223 = dma.done [#allocation10], 18432
        $region40: #{tpu_custom_call.1} parent=31 // pred_fallthru
          _
        %s224 = sand.u32 %s60, 1
        %s225 = scalar_lea.sflag [#allocation7], %s224
        %s226 = sand.u32 %s60, 1
        %s227 = smul.addr %s226, 64
        %s228 = scalar_lea.vmem [#allocation6], %s227
        %p229 = pneg %p73
        %p230 = pneg %p70
        %p231 = pneg %p94
        %p232 = pneg %p91
        %p233 = pneg %p115
        %p234 = pneg %p112
        %p235 = pneg %p145
        %p236 = pneg %p142
        %s237 = sand.u32 %s132, 1
        %s238 = scalar_lea.sflag [#allocation8], %s237
        %s239 = sand.u32 %s132, 1
        %s240 = smul.addr %s239, 64
        %s241 = scalar_lea.vmem [#allocation11], %s240
        %s242 = sld [smem:[#allocation3 + %s41]]
        %s243 = sld [smem:[#allocation4 + %s41]]
        %v244 = vld [vmem:[%s215] sm:$0xff]
        %v245 = vld [vmem:[%s215 + $0x8] sm:$0xff]
        %v246 = vld [vmem:[%s215 + $0x10] sm:$0xff]
        %v247 = vld [vmem:[%s215 + $0x18] sm:$0xff]
        %v248 = vld [vmem:[%s215 + $0x20] sm:$0xff]
        %v249 = vld [vmem:[%s215 + $0x28] sm:$0xff]
        %v250 = vld [vmem:[%s215 + $0x30] sm:$0xff]
        %v251 = vld [vmem:[%s215 + $0x38] sm:$0xff]
        %v252 = vlaneseq
        %v253 = vshrl.u32 %v252, 7
        %v254 = vadd.s32 %v253, 8
        %v255 = vadd.s32 %v253, 16
        %v256 = vadd.s32 %v253, 24
        %v257 = vadd.s32 %v253, 32
        %v258 = vadd.s32 %v253, 40
        %v259 = vadd.s32 %v253, 48
        %v260 = vadd.s32 %v253, 56
        %vm261 = vcmp.lt.s32.totalorder %v253, 0
        %v262 = vsub.s32 0, %v253
        %v263 = vsel %vm261, %v262, %v253
        %v264 = vshrl.u32 %v263, 3
        %v265 = vand.u32 %v263, 7
        %v266 = vsub.s32 0, %v265
        %v267 = vsel %vm261, %v266, %v265
        %vm268 = vcmp.lt.s32.totalorder %v254, 0
        %v269 = vsub.s32 0, %v254
        %v270 = vsel %vm268, %v269, %v254
        %v271 = vshrl.u32 %v270, 3
        %v272 = vand.u32 %v270, 7
        %v273 = vsub.s32 0, %v272
        %v274 = vsel %vm268, %v273, %v272
        %vm275 = vcmp.lt.s32.totalorder %v255, 0
        %v276 = vsub.s32 0, %v255
        %v277 = vsel %vm275, %v276, %v255
        %v278 = vshrl.u32 %v277, 3
        %v279 = vand.u32 %v277, 7
        %v280 = vsub.s32 0, %v279
        %v281 = vsel %vm275, %v280, %v279
        %vm282 = vcmp.lt.s32.totalorder %v256, 0
        %v283 = vsub.s32 0, %v256
        %v284 = vsel %vm282, %v283, %v256
        %v285 = vshrl.u32 %v284, 3
        %v286 = vand.u32 %v284, 7
        %v287 = vsub.s32 0, %v286
        %v288 = vsel %vm282, %v287, %v286
        %vm289 = vcmp.lt.s32.totalorder %v257, 0
        %v290 = vsub.s32 0, %v257
        %v291 = vsel %vm289, %v290, %v257
        %v292 = vshrl.u32 %v291, 3
        %v293 = vand.u32 %v291, 7
        %v294 = vsub.s32 0, %v293
        %v295 = vsel %vm289, %v294, %v293
        %vm296 = vcmp.lt.s32.totalorder %v258, 0
        %v297 = vsub.s32 0, %v258
        %v298 = vsel %vm296, %v297, %v258
        %v299 = vshrl.u32 %v298, 3
        %v300 = vand.u32 %v298, 7
        %v301 = vsub.s32 0, %v300
        %v302 = vsel %vm296, %v301, %v300
        %vm303 = vcmp.lt.s32.totalorder %v259, 0
        %v304 = vsub.s32 0, %v259
        %v305 = vsel %vm303, %v304, %v259
        %v306 = vshrl.u32 %v305, 3
        %v307 = vand.u32 %v305, 7
        %v308 = vsub.s32 0, %v307
        %v309 = vsel %vm303, %v308, %v307
        %vm310 = vcmp.lt.s32.totalorder %v260, 0
        %v311 = vsub.s32 0, %v260
        %v312 = vsel %vm310, %v311, %v260
        %v313 = vshrl.u32 %v312, 3
        %v314 = vand.u32 %v312, 7
        %v315 = vsub.s32 0, %v314
        %v316 = vsel %vm310, %v315, %v314
        %vm317 = vcmp.ne.s32.totalorder %v267, 0
        %vm318 = vcmp.ne.s32.totalorder %v274, 0
        %vm319 = vcmp.ne.s32.totalorder %v281, 0
        %vm320 = vcmp.ne.s32.totalorder %v288, 0
        %vm321 = vcmp.ne.s32.totalorder %v295, 0
        %vm322 = vcmp.ne.s32.totalorder %v302, 0
        %vm323 = vcmp.ne.s32.totalorder %v309, 0
        %vm324 = vcmp.ne.s32.totalorder %v316, 0
        %vm325 = vcmp.lt.s32.totalorder %v267, 0
        %vm326 = vcmp.lt.s32.totalorder %v274, 0
        %vm327 = vcmp.lt.s32.totalorder %v281, 0
        %vm328 = vcmp.lt.s32.totalorder %v288, 0
        %vm329 = vcmp.lt.s32.totalorder %v295, 0
        %vm330 = vcmp.lt.s32.totalorder %v302, 0
        %vm331 = vcmp.lt.s32.totalorder %v309, 0
        %vm332 = vcmp.lt.s32.totalorder %v316, 0
        %vm333 = vmand %vm325, %vm317
        %vm334 = vmand %vm326, %vm318
        %vm335 = vmand %vm327, %vm319
        %vm336 = vmand %vm328, %vm320
        %vm337 = vmand %vm329, %vm321
        %vm338 = vmand %vm330, %vm322
        %vm339 = vmand %vm331, %vm323
        %vm340 = vmand %vm332, %vm324
        %v341 = vadd.s32 %v267, 8
        %v342 = vadd.s32 %v274, 8
        %v343 = vadd.s32 %v281, 8
        %v344 = vadd.s32 %v288, 8
        %v345 = vadd.s32 %v295, 8
        %v346 = vadd.s32 %v302, 8
        %v347 = vadd.s32 %v309, 8
        %v348 = vadd.s32 %v316, 8
        %v349 = vsel %vm333, %v341, %v267
        %v350 = vsel %vm334, %v342, %v274
        %v351 = vsel %vm335, %v343, %v281
        %v352 = vsel %vm336, %v344, %v288
        %v353 = vsel %vm337, %v345, %v295
        %v354 = vsel %vm338, %v346, %v302
        %v355 = vsel %vm339, %v347, %v309
        %v356 = vsel %vm340, %v348, %v316
        %vm357 = vcmp.ge.s32.totalorder %v253, 8
        %vm358 = vcmp.ge.s32.totalorder %v254, 8
        %vm359 = vcmp.ge.s32.totalorder %v255, 8
        %vm360 = vcmp.ge.s32.totalorder %v256, 8
        %vm361 = vcmp.ge.s32.totalorder %v257, 8
        %vm362 = vcmp.ge.s32.totalorder %v258, 8
        %vm363 = vcmp.ge.s32.totalorder %v259, 8
        %vm364 = vcmp.ge.s32.totalorder %v260, 8
        %vm365 = vcmp.lt.s32.totalorder %v253, 56
        %vm366 = vcmp.lt.s32.totalorder %v254, 56
        %vm367 = vcmp.lt.s32.totalorder %v255, 56
        %vm368 = vcmp.lt.s32.totalorder %v256, 56
        %vm369 = vcmp.lt.s32.totalorder %v257, 56
        %vm370 = vcmp.lt.s32.totalorder %v258, 56
        %vm371 = vcmp.lt.s32.totalorder %v259, 56
        %vm372 = vcmp.lt.s32.totalorder %v260, 56
        %vm373 = vcmp.ne.s32.totalorder %v349, 0
        %vm374 = vcmp.ne.s32.totalorder %v350, 0
        %vm375 = vcmp.ne.s32.totalorder %v351, 0
        %vm376 = vcmp.ne.s32.totalorder %v352, 0
        %vm377 = vcmp.ne.s32.totalorder %v353, 0
        %vm378 = vcmp.ne.s32.totalorder %v354, 0
        %vm379 = vcmp.ne.s32.totalorder %v355, 0
        %vm380 = vcmp.ne.s32.totalorder %v356, 0
        %vm381 = vcmp.ne.s32.totalorder %v349, 7
        %vm382 = vcmp.ne.s32.totalorder %v350, 7
        %vm383 = vcmp.ne.s32.totalorder %v351, 7
        %vm384 = vcmp.ne.s32.totalorder %v352, 7
        %vm385 = vcmp.ne.s32.totalorder %v353, 7
        %vm386 = vcmp.ne.s32.totalorder %v354, 7
        %vm387 = vcmp.ne.s32.totalorder %v355, 7
        %vm388 = vcmp.ne.s32.totalorder %v356, 7
        %vm389 = vmand %vm357, %vm373
        %vm390 = vmand %vm358, %vm374
        %vm391 = vmand %vm359, %vm375
        %vm392 = vmand %vm360, %vm376
        %vm393 = vmand %vm361, %vm377
        %vm394 = vmand %vm362, %vm378
        %vm395 = vmand %vm363, %vm379
        %vm396 = vmand %vm364, %vm380
        %vm397 = vmand %vm357, %vm381
        %vm398 = vmand %vm358, %vm382
        %vm399 = vmand %vm359, %vm383
        %vm400 = vmand %vm360, %vm384
        %vm401 = vmand %vm361, %vm385
        %vm402 = vmand %vm362, %vm386
        %vm403 = vmand %vm363, %vm387
        %vm404 = vmand %vm364, %vm388
        %vm405 = vmand %vm365, %vm373
        %vm406 = vmand %vm366, %vm374
        %vm407 = vmand %vm367, %vm375
        %vm408 = vmand %vm368, %vm376
        %vm409 = vmand %vm369, %vm377
        %vm410 = vmand %vm370, %vm378
        %vm411 = vmand %vm371, %vm379
        %vm412 = vmand %vm372, %vm380
        %vm413 = vmand %vm365, %vm381
        %vm414 = vmand %vm366, %vm382
        %vm415 = vmand %vm367, %vm383
        %vm416 = vmand %vm368, %vm384
        %vm417 = vmand %vm369, %vm385
        %vm418 = vmand %vm370, %vm386
        %vm419 = vmand %vm371, %vm387
        %vm420 = vmand %vm372, %vm388
        %s421 = scalar_lea.vmem [#allocation9], 512
        %v422 = vld [vmem:[%s421] sm:$0xff]
        %v423 = vld [vmem:[%s421 + $0x8] sm:$0xff]
        %v424 = vld [vmem:[%s421 + $0x10] sm:$0xff]
        %v425 = vld [vmem:[%s421 + $0x18] sm:$0xff]
        %v426 = vld [vmem:[%s421 + $0x20] sm:$0xff]
        %v427 = vld [vmem:[%s421 + $0x28] sm:$0xff]
        %v428 = vld [vmem:[%s421 + $0x30] sm:$0xff]
        %v429 = vld [vmem:[%s421 + $0x38] sm:$0xff]
        %v430 = vld [vmem:[%s421 + $0x40] sm:$0xff]
        %v431 = vld [vmem:[%s421 + $0x48] sm:$0xff]
        %v432 = vld [vmem:[%s421 + $0x50] sm:$0xff]
        %v433 = vld [vmem:[%s421 + $0x58] sm:$0xff]
        %v434 = vld [vmem:[%s421 + $0x60] sm:$0xff]
        %v435 = vld [vmem:[%s421 + $0x68] sm:$0xff]
        %v436 = vld [vmem:[%s421 + $0x70] sm:$0xff]
        %v437 = vld [vmem:[%s421 + $0x78] sm:$0xff]
        %v438 = vrot.slane %v244, 7
        %v439 = vrot.slane %v245, 7
        %v440 = vrot.slane %v246, 7
        %v441 = vrot.slane %v247, 7
        %v442 = vrot.slane %v248, 7
        %v443 = vrot.slane %v249, 7
        %v444 = vrot.slane %v250, 7
        %v445 = vrot.slane %v251, 7
        %vm446 = vcmp.lt.s32.totalorder %v253, 1
        %v447 = vsel %vm446, %v444, %v445
        %v448 = vsel %vm446, %v443, %v444
        %v449 = vsel %vm446, %v442, %v443
        %v450 = vsel %vm446, %v441, %v442
        %v451 = vsel %vm446, %v440, %v441
        %v452 = vsel %vm446, %v439, %v440
        %v453 = vsel %vm446, %v438, %v439
        %v454 = vsel %vm446, %v445, %v438
        %v455 = vsel %vm389, %v447, 0.0
        %v456 = vsel %vm390, %v454, 0.0
        %v457 = vsel %vm391, %v453, 0.0
        %v458 = vsel %vm392, %v452, 0.0
        %v459 = vsel %vm393, %v451, 0.0
        %v460 = vsel %vm394, %v450, 0.0
        %v461 = vsel %vm395, %v449, 0.0
        %v462 = vsel %vm396, %v448, 0.0
        %v463 = vld [vmem:[#allocation9] sm:$0xff]
        %v464 = vld [vmem:[#allocation9 + $0x8] sm:$0xff]
        %v465 = vld [vmem:[#allocation9 + $0x10] sm:$0xff]
        %v466 = vld [vmem:[#allocation9 + $0x18] sm:$0xff]
        %v467 = vld [vmem:[#allocation9 + $0x20] sm:$0xff]
        %v468 = vld [vmem:[#allocation9 + $0x28] sm:$0xff]
        %v469 = vld [vmem:[#allocation9 + $0x30] sm:$0xff]
        %v470 = vld [vmem:[#allocation9 + $0x38] sm:$0xff]
        %v471 = vld [vmem:[#allocation9 + $0x40] sm:$0xff]
        %v472 = vld [vmem:[#allocation9 + $0x48] sm:$0xff]
        %v473 = vld [vmem:[#allocation9 + $0x50] sm:$0xff]
        %v474 = vld [vmem:[#allocation9 + $0x58] sm:$0xff]
        %v475 = vld [vmem:[#allocation9 + $0x60] sm:$0xff]
        %v476 = vld [vmem:[#allocation9 + $0x68] sm:$0xff]
        %v477 = vld [vmem:[#allocation9 + $0x70] sm:$0xff]
        %v478 = vld [vmem:[#allocation9 + $0x78] sm:$0xff]
        %479 = vmatprep.subr.mxu0 0.0
        %480 = vmatpush1.msra.mxu0 %v478
        %481 = vmatprep.subr.mxu0 0.0
        %482 = vmatpush1.msra.mxu0 %v477
        %483 = vmatprep.subr.mxu0 0.0
        %484 = vmatpush1.msra.mxu0 %v476
        %485 = vmatprep.subr.mxu0 0.0
        %486 = vmatpush1.msra.mxu0 %v475
        %487 = vmatprep.subr.mxu0 0.0
        %488 = vmatpush1.msra.mxu0 %v474
        %489 = vmatprep.subr.mxu0 0.0
        %490 = vmatpush1.msra.mxu0 %v473
        %491 = vmatprep.subr.mxu0 0.0
        %492 = vmatpush1.msra.mxu0 %v472
        %493 = vmatprep.subr.mxu0 0.0
        %494 = vmatpush1.msra.mxu0 %v471
        %495 = vmatprep.subr.mxu0 0.0
        %496 = vmatpush1.msra.mxu0 %v470
        %497 = vmatprep.subr.mxu0 0.0
        %498 = vmatpush1.msra.mxu0 %v469
        %499 = vmatprep.subr.mxu0 0.0
        %500 = vmatpush1.msra.mxu0 %v468
        %501 = vmatprep.subr.mxu0 0.0
        %502 = vmatpush1.msra.mxu0 %v467
        %503 = vmatprep.subr.mxu0 0.0
        %504 = vmatpush1.msra.mxu0 %v466
        %505 = vmatprep.subr.mxu0 0.0
        %506 = vmatpush1.msra.mxu0 %v465
        %507 = vmatprep.subr.mxu0 0.0
        %508 = vmatpush1.msra.mxu0 %v464
        %509 = vmatprep.subr.mxu0 0.0
        %510 = vmatpush1.msra.mxu0 %v463
        %511 = vmatprep.subr.mxu0 0.0
        %512 = vmatpush2.msra.mxu0 0.0
        %513 = vmatprep.subr.mxu0 0.0
        %514 = vmatpush2.msra.mxu0 0.0
        %515 = vmatprep.subr.mxu0 0.0
        %516 = vmatpush2.msra.mxu0 0.0
        %517 = vmatprep.subr.mxu0 0.0
        %518 = vmatpush2.msra.mxu0 0.0
        %519 = vmatprep.subr.mxu0 0.0
        %520 = vmatpush2.msra.mxu0 0.0
        %521 = vmatprep.subr.mxu0 0.0
        %522 = vmatpush2.msra.mxu0 0.0
        %523 = vmatprep.subr.mxu0 0.0
        %524 = vmatpush2.msra.mxu0 0.0
        %525 = vmatprep.subr.mxu0 0.0
        %526 = vmatpush2.msra.mxu0 0.0
        %527 = vmatprep.subr.mxu0 0.0
        %528 = vmatpush2.msra.mxu0 0.0
        %529 = vmatprep.subr.mxu0 0.0
        %530 = vmatpush2.msra.mxu0 0.0
        %531 = vmatprep.subr.mxu0 0.0
        %532 = vmatpush2.msra.mxu0 0.0
        %533 = vmatprep.subr.mxu0 0.0
        %534 = vmatpush2.msra.mxu0 0.0
        %535 = vmatprep.subr.mxu0 0.0
        %536 = vmatpush2.msra.mxu0 0.0
        %537 = vmatprep.subr.mxu0 0.0
        %538 = vmatpush2.msra.mxu0 0.0
        %539 = vmatprep.subr.mxu0 0.0
        %540 = vmatpush2.msra.mxu0 0.0
        %541 = vmatprep.subr.mxu0 0.0
        %542 = vmatpush2.msra.mxu0 0.0
        %543 = vmatprep.mubr.f32.mxu0 0.0
        %544 = vmatmul.mubr.f32.gmra.mxu0 %v455
        %v545 = vpop.f32.mrf.mxu0
        %v546 = vadd.f32 0.0, %v545
        %v547 = vpop.f32.mrf.mxu0
        %548 = vmatprep.mubr.f32.mxu0 0.0
        %549 = vmatmul.mubr.f32.gmra.mxu0 %v456
        %v550 = vpop.f32.mrf.mxu0
        %v551 = vadd.f32 0.0, %v550
        %v552 = vpop.f32.mrf.mxu0
        %553 = vmatprep.mubr.f32.mxu0 0.0
        %554 = vmatmul.mubr.f32.gmra.mxu0 %v457
        %v555 = vpop.f32.mrf.mxu0
        %v556 = vadd.f32 0.0, %v555
        %v557 = vpop.f32.mrf.mxu0
        %558 = vmatprep.mubr.f32.mxu0 0.0
        %559 = vmatmul.mubr.f32.gmra.mxu0 %v458
        %v560 = vpop.f32.mrf.mxu0
        %v561 = vadd.f32 0.0, %v560
        %v562 = vpop.f32.mrf.mxu0
        %563 = vmatprep.mubr.f32.mxu0 0.0
        %564 = vmatmul.mubr.f32.gmra.mxu0 %v459
        %v565 = vpop.f32.mrf.mxu0
        %v566 = vadd.f32 0.0, %v565
        %v567 = vpop.f32.mrf.mxu0
        %568 = vmatprep.mubr.f32.mxu0 0.0
        %569 = vmatmul.mubr.f32.gmra.mxu0 %v460
        %v570 = vpop.f32.mrf.mxu0
        %v571 = vadd.f32 0.0, %v570
        %v572 = vpop.f32.mrf.mxu0
        %573 = vmatprep.mubr.f32.mxu0 0.0
        %574 = vmatmul.mubr.f32.gmra.mxu0 %v461
        %v575 = vpop.f32.mrf.mxu0
        %v576 = vadd.f32 0.0, %v575
        %v577 = vpop.f32.mrf.mxu0
        %578 = vmatprep.mubr.f32.mxu0 0.0
        %579 = vmatmul.mubr.f32.gmra.mxu0 %v462
        %v580 = vpop.f32.mrf.mxu0
        %v581 = vadd.f32 0.0, %v580
        %v582 = vpop.f32.mrf.mxu0
        %583 = vdwg.mxu0
        %584 = vmatprep.subr.mxu0 0.0
        %585 = vmatpush1.msra.mxu0 %v437
        %586 = vmatprep.subr.mxu0 0.0
        %587 = vmatpush1.msra.mxu0 %v436
        %588 = vmatprep.subr.mxu0 0.0
        %589 = vmatpush1.msra.mxu0 %v435
        %590 = vmatprep.subr.mxu0 0.0
        %591 = vmatpush1.msra.mxu0 %v434
        %592 = vmatprep.subr.mxu0 0.0
        %593 = vmatpush1.msra.mxu0 %v433
        %594 = vmatprep.subr.mxu0 0.0
        %595 = vmatpush1.msra.mxu0 %v432
        %596 = vmatprep.subr.mxu0 0.0
        %597 = vmatpush1.msra.mxu0 %v431
        %598 = vmatprep.subr.mxu0 0.0
        %599 = vmatpush1.msra.mxu0 %v430
        %600 = vmatprep.subr.mxu0 0.0
        %601 = vmatpush1.msra.mxu0 %v429
        %602 = vmatprep.subr.mxu0 0.0
        %603 = vmatpush1.msra.mxu0 %v428
        %604 = vmatprep.subr.mxu0 0.0
        %605 = vmatpush1.msra.mxu0 %v427
        %606 = vmatprep.subr.mxu0 0.0
        %607 = vmatpush1.msra.mxu0 %v426
        %608 = vmatprep.subr.mxu0 0.0
        %609 = vmatpush1.msra.mxu0 %v425
        %610 = vmatprep.subr.mxu0 0.0
        %611 = vmatpush1.msra.mxu0 %v424
        %612 = vmatprep.subr.mxu0 0.0
        %613 = vmatpush1.msra.mxu0 %v423
        %614 = vmatprep.subr.mxu0 0.0
        %615 = vmatpush1.msra.mxu0 %v422
        %616 = vmatprep.subr.mxu0 0.0
        %617 = vmatpush2.msra.mxu0 0.0
        %618 = vmatprep.subr.mxu0 0.0
        %619 = vmatpush2.msra.mxu0 0.0
        %620 = vmatprep.subr.mxu0 0.0
        %621 = vmatpush2.msra.mxu0 0.0
        %622 = vmatprep.subr.mxu0 0.0
        %623 = vmatpush2.msra.mxu0 0.0
        %624 = vmatprep.subr.mxu0 0.0
        %625 = vmatpush2.msra.mxu0 0.0
        %626 = vmatprep.subr.mxu0 0.0
        %627 = vmatpush2.msra.mxu0 0.0
        %628 = vmatprep.subr.mxu0 0.0
        %629 = vmatpush2.msra.mxu0 0.0
        %630 = vmatprep.subr.mxu0 0.0
        %631 = vmatpush2.msra.mxu0 0.0
        %632 = vmatprep.subr.mxu0 0.0
        %633 = vmatpush2.msra.mxu0 0.0
        %634 = vmatprep.subr.mxu0 0.0
        %635 = vmatpush2.msra.mxu0 0.0
        %636 = vmatprep.subr.mxu0 0.0
        %637 = vmatpush2.msra.mxu0 0.0
        %638 = vmatprep.subr.mxu0 0.0
        %639 = vmatpush2.msra.mxu0 0.0
        %640 = vmatprep.subr.mxu0 0.0
        %641 = vmatpush2.msra.mxu0 0.0
        %642 = vmatprep.subr.mxu0 0.0
        %643 = vmatpush2.msra.mxu0 0.0
        %644 = vmatprep.subr.mxu0 0.0
        %645 = vmatpush2.msra.mxu0 0.0
        %646 = vmatprep.subr.mxu0 0.0
        %647 = vmatpush2.msra.mxu0 0.0
        %648 = vmatprep.mubr.f32.mxu0 0.0
        %649 = vmatmul.mubr.f32.gmra.mxu0 %v244
        %v650 = vpop.f32.mrf.mxu0
        %v651 = vadd.f32 %v546, %v650
        %v652 = vpop.f32.mrf.mxu0
        %653 = vmatprep.mubr.f32.mxu0 0.0
        %654 = vmatmul.mubr.f32.gmra.mxu0 %v245
        %v655 = vpop.f32.mrf.mxu0
        %v656 = vadd.f32 %v551, %v655
        %v657 = vpop.f32.mrf.mxu0
        %658 = vmatprep.mubr.f32.mxu0 0.0
        %659 = vmatmul.mubr.f32.gmra.mxu0 %v246
        %v660 = vpop.f32.mrf.mxu0
        %v661 = vadd.f32 %v556, %v660
        %v662 = vpop.f32.mrf.mxu0
        %663 = vmatprep.mubr.f32.mxu0 0.0
        %664 = vmatmul.mubr.f32.gmra.mxu0 %v247
        %v665 = vpop.f32.mrf.mxu0
        %v666 = vadd.f32 %v561, %v665
        %v667 = vpop.f32.mrf.mxu0
        %668 = vmatprep.mubr.f32.mxu0 0.0
        %669 = vmatmul.mubr.f32.gmra.mxu0 %v248
        %v670 = vpop.f32.mrf.mxu0
        %v671 = vadd.f32 %v566, %v670
        %v672 = vpop.f32.mrf.mxu0
        %673 = vmatprep.mubr.f32.mxu0 0.0
        %674 = vmatmul.mubr.f32.gmra.mxu0 %v249
        %v675 = vpop.f32.mrf.mxu0
        %v676 = vadd.f32 %v571, %v675
        %v677 = vpop.f32.mrf.mxu0
        %678 = vmatprep.mubr.f32.mxu0 0.0
        %679 = vmatmul.mubr.f32.gmra.mxu0 %v250
        %v680 = vpop.f32.mrf.mxu0
        %v681 = vadd.f32 %v576, %v680
        %v682 = vpop.f32.mrf.mxu0
        %683 = vmatprep.mubr.f32.mxu0 0.0
        %684 = vmatmul.mubr.f32.gmra.mxu0 %v251
        %v685 = vpop.f32.mrf.mxu0
        %v686 = vadd.f32 %v581, %v685
        %v687 = vpop.f32.mrf.mxu0
        %688 = vdwg.mxu0
        %v689 = vsel %vm357, %v251, 0.0
        %v690 = vsel %vm358, %v244, 0.0
        %v691 = vsel %vm359, %v245, 0.0
        %v692 = vsel %vm360, %v246, 0.0
        %v693 = vsel %vm361, %v247, 0.0
        %v694 = vsel %vm362, %v248, 0.0
        %v695 = vsel %vm363, %v249, 0.0
        %v696 = vsel %vm364, %v250, 0.0
        %s697 = scalar_lea.vmem [#allocation9], 128
        %v698 = vld [vmem:[%s697] sm:$0xff]
        %v699 = vld [vmem:[%s697 + $0x8] sm:$0xff]
        %v700 = vld [vmem:[%s697 + $0x10] sm:$0xff]
        %v701 = vld [vmem:[%s697 + $0x18] sm:$0xff]
        %v702 = vld [vmem:[%s697 + $0x20] sm:$0xff]
        %v703 = vld [vmem:[%s697 + $0x28] sm:$0xff]
        %v704 = vld [vmem:[%s697 + $0x30] sm:$0xff]
        %v705 = vld [vmem:[%s697 + $0x38] sm:$0xff]
        %v706 = vld [vmem:[%s697 + $0x40] sm:$0xff]
        %v707 = vld [vmem:[%s697 + $0x48] sm:$0xff]
        %v708 = vld [vmem:[%s697 + $0x50] sm:$0xff]
        %v709 = vld [vmem:[%s697 + $0x58] sm:$0xff]
        %v710 = vld [vmem:[%s697 + $0x60] sm:$0xff]
        %v711 = vld [vmem:[%s697 + $0x68] sm:$0xff]
        %v712 = vld [vmem:[%s697 + $0x70] sm:$0xff]
        %v713 = vld [vmem:[%s697 + $0x78] sm:$0xff]
        %714 = vmatprep.subr.mxu0 0.0
        %715 = vmatpush1.msra.mxu0 %v713
        %716 = vmatprep.subr.mxu0 0.0
        %717 = vmatpush1.msra.mxu0 %v712
        %718 = vmatprep.subr.mxu0 0.0
        %719 = vmatpush1.msra.mxu0 %v711
        %720 = vmatprep.subr.mxu0 0.0
        %721 = vmatpush1.msra.mxu0 %v710
        %722 = vmatprep.subr.mxu0 0.0
        %723 = vmatpush1.msra.mxu0 %v709
        %724 = vmatprep.subr.mxu0 0.0
        %725 = vmatpush1.msra.mxu0 %v708
        %726 = vmatprep.subr.mxu0 0.0
        %727 = vmatpush1.msra.mxu0 %v707
        %728 = vmatprep.subr.mxu0 0.0
        %729 = vmatpush1.msra.mxu0 %v706
        %730 = vmatprep.subr.mxu0 0.0
        %731 = vmatpush1.msra.mxu0 %v705
        %732 = vmatprep.subr.mxu0 0.0
        %733 = vmatpush1.msra.mxu0 %v704
        %734 = vmatprep.subr.mxu0 0.0
        %735 = vmatpush1.msra.mxu0 %v703
        %736 = vmatprep.subr.mxu0 0.0
        %737 = vmatpush1.msra.mxu0 %v702
        %738 = vmatprep.subr.mxu0 0.0
        %739 = vmatpush1.msra.mxu0 %v701
        %740 = vmatprep.subr.mxu0 0.0
        %741 = vmatpush1.msra.mxu0 %v700
        %742 = vmatprep.subr.mxu0 0.0
        %743 = vmatpush1.msra.mxu0 %v699
        %744 = vmatprep.subr.mxu0 0.0
        %745 = vmatpush1.msra.mxu0 %v698
        %746 = vmatprep.subr.mxu0 0.0
        %747 = vmatpush2.msra.mxu0 0.0
        %748 = vmatprep.subr.mxu0 0.0
        %749 = vmatpush2.msra.mxu0 0.0
        %750 = vmatprep.subr.mxu0 0.0
        %751 = vmatpush2.msra.mxu0 0.0
        %752 = vmatprep.subr.mxu0 0.0
        %753 = vmatpush2.msra.mxu0 0.0
        %754 = vmatprep.subr.mxu0 0.0
        %755 = vmatpush2.msra.mxu0 0.0
        %756 = vmatprep.subr.mxu0 0.0
        %757 = vmatpush2.msra.mxu0 0.0
        %758 = vmatprep.subr.mxu0 0.0
        %759 = vmatpush2.msra.mxu0 0.0
        %760 = vmatprep.subr.mxu0 0.0
        %761 = vmatpush2.msra.mxu0 0.0
        %762 = vmatprep.subr.mxu0 0.0
        %763 = vmatpush2.msra.mxu0 0.0
        %764 = vmatprep.subr.mxu0 0.0
        %765 = vmatpush2.msra.mxu0 0.0
        %766 = vmatprep.subr.mxu0 0.0
        %767 = vmatpush2.msra.mxu0 0.0
        %768 = vmatprep.subr.mxu0 0.0
        %769 = vmatpush2.msra.mxu0 0.0
        %770 = vmatprep.subr.mxu0 0.0
        %771 = vmatpush2.msra.mxu0 0.0
        %772 = vmatprep.subr.mxu0 0.0
        %773 = vmatpush2.msra.mxu0 0.0
        %774 = vmatprep.subr.mxu0 0.0
        %775 = vmatpush2.msra.mxu0 0.0
        %776 = vmatprep.subr.mxu0 0.0
        %777 = vmatpush2.msra.mxu0 0.0
        %778 = vmatprep.mubr.f32.mxu0 0.0
        %779 = vmatmul.mubr.f32.gmra.mxu0 %v689
        %v780 = vpop.f32.mrf.mxu0
        %v781 = vadd.f32 0.0, %v780
        %v782 = vpop.f32.mrf.mxu0
        %783 = vmatprep.mubr.f32.mxu0 0.0
        %784 = vmatmul.mubr.f32.gmra.mxu0 %v690
        %v785 = vpop.f32.mrf.mxu0
        %v786 = vadd.f32 0.0, %v785
        %v787 = vpop.f32.mrf.mxu0
        %788 = vmatprep.mubr.f32.mxu0 0.0
        %789 = vmatmul.mubr.f32.gmra.mxu0 %v691
        %v790 = vpop.f32.mrf.mxu0
        %v791 = vadd.f32 0.0, %v790
        %v792 = vpop.f32.mrf.mxu0
        %793 = vmatprep.mubr.f32.mxu0 0.0
        %794 = vmatmul.mubr.f32.gmra.mxu0 %v692
        %v795 = vpop.f32.mrf.mxu0
        %v796 = vadd.f32 0.0, %v795
        %v797 = vpop.f32.mrf.mxu0
        %798 = vmatprep.mubr.f32.mxu0 0.0
        %799 = vmatmul.mubr.f32.gmra.mxu0 %v693
        %v800 = vpop.f32.mrf.mxu0
        %v801 = vadd.f32 0.0, %v800
        %v802 = vpop.f32.mrf.mxu0
        %803 = vmatprep.mubr.f32.mxu0 0.0
        %804 = vmatmul.mubr.f32.gmra.mxu0 %v694
        %v805 = vpop.f32.mrf.mxu0
        %v806 = vadd.f32 0.0, %v805
        %v807 = vpop.f32.mrf.mxu0
        %808 = vmatprep.mubr.f32.mxu0 0.0
        %809 = vmatmul.mubr.f32.gmra.mxu0 %v695
        %v810 = vpop.f32.mrf.mxu0
        %v811 = vadd.f32 0.0, %v810
        %v812 = vpop.f32.mrf.mxu0
        %813 = vmatprep.mubr.f32.mxu0 0.0
        %814 = vmatmul.mubr.f32.gmra.mxu0 %v696
        %v815 = vpop.f32.mrf.mxu0
        %v816 = vadd.f32 0.0, %v815
        %v817 = vpop.f32.mrf.mxu0
        %818 = vdwg.mxu0
        %v819 = vadd.f32 %v651, %v781
        %v820 = vadd.f32 %v656, %v786
        %v821 = vadd.f32 %v661, %v791
        %v822 = vadd.f32 %v666, %v796
        %v823 = vadd.f32 %v671, %v801
        %v824 = vadd.f32 %v676, %v806
        %v825 = vadd.f32 %v681, %v811
        %v826 = vadd.f32 %v686, %v816
        %v827 = vrot.slane %v244, 1
        %v828 = vrot.slane %v245, 1
        %v829 = vrot.slane %v246, 1
        %v830 = vrot.slane %v247, 1
        %v831 = vrot.slane %v248, 1
        %v832 = vrot.slane %v249, 1
        %v833 = vrot.slane %v250, 1
        %v834 = vrot.slane %v251, 1
        %vm835 = vcmp.lt.s32.totalorder %v253, 7
        %v836 = vsel %vm835, %v833, %v834
        %v837 = vsel %vm835, %v832, %v833
        %v838 = vsel %vm835, %v831, %v832
        %v839 = vsel %vm835, %v830, %v831
        %v840 = vsel %vm835, %v829, %v830
        %v841 = vsel %vm835, %v828, %v829
        %v842 = vsel %vm835, %v827, %v828
        %v843 = vsel %vm835, %v834, %v827
        %v844 = vsel %vm397, %v843, 0.0
        %v845 = vsel %vm398, %v842, 0.0
        %v846 = vsel %vm399, %v841, 0.0
        %v847 = vsel %vm400, %v840, 0.0
        %v848 = vsel %vm401, %v839, 0.0
        %v849 = vsel %vm402, %v838, 0.0
        %v850 = vsel %vm403, %v837, 0.0
        %v851 = vsel %vm404, %v836, 0.0
        %s852 = scalar_lea.vmem [#allocation9], 256
        %v853 = vld [vmem:[%s852] sm:$0xff]
        %v854 = vld [vmem:[%s852 + $0x8] sm:$0xff]
        %v855 = vld [vmem:[%s852 + $0x10] sm:$0xff]
        %v856 = vld [vmem:[%s852 + $0x18] sm:$0xff]
        %v857 = vld [vmem:[%s852 + $0x20] sm:$0xff]
        %v858 = vld [vmem:[%s852 + $0x28] sm:$0xff]
        %v859 = vld [vmem:[%s852 + $0x30] sm:$0xff]
        %v860 = vld [vmem:[%s852 + $0x38] sm:$0xff]
        %v861 = vld [vmem:[%s852 + $0x40] sm:$0xff]
        %v862 = vld [vmem:[%s852 + $0x48] sm:$0xff]
        %v863 = vld [vmem:[%s852 + $0x50] sm:$0xff]
        %v864 = vld [vmem:[%s852 + $0x58] sm:$0xff]
        %v865 = vld [vmem:[%s852 + $0x60] sm:$0xff]
        %v866 = vld [vmem:[%s852 + $0x68] sm:$0xff]
        %v867 = vld [vmem:[%s852 + $0x70] sm:$0xff]
        %v868 = vld [vmem:[%s852 + $0x78] sm:$0xff]
        %869 = vmatprep.subr.mxu0 0.0
        %870 = vmatpush1.msra.mxu0 %v868
        %871 = vmatprep.subr.mxu0 0.0
        %872 = vmatpush1.msra.mxu0 %v867
        %873 = vmatprep.subr.mxu0 0.0
        %874 = vmatpush1.msra.mxu0 %v866
        %875 = vmatprep.subr.mxu0 0.0
        %876 = vmatpush1.msra.mxu0 %v865
        %877 = vmatprep.subr.mxu0 0.0
        %878 = vmatpush1.msra.mxu0 %v864
        %879 = vmatprep.subr.mxu0 0.0
        %880 = vmatpush1.msra.mxu0 %v863
        %881 = vmatprep.subr.mxu0 0.0
        %882 = vmatpush1.msra.mxu0 %v862
        %883 = vmatprep.subr.mxu0 0.0
        %884 = vmatpush1.msra.mxu0 %v861
        %885 = vmatprep.subr.mxu0 0.0
        %886 = vmatpush1.msra.mxu0 %v860
        %887 = vmatprep.subr.mxu0 0.0
        %888 = vmatpush1.msra.mxu0 %v859
        %889 = vmatprep.subr.mxu0 0.0
        %890 = vmatpush1.msra.mxu0 %v858
        %891 = vmatprep.subr.mxu0 0.0
        %892 = vmatpush1.msra.mxu0 %v857
        %893 = vmatprep.subr.mxu0 0.0
        %894 = vmatpush1.msra.mxu0 %v856
        %895 = vmatprep.subr.mxu0 0.0
        %896 = vmatpush1.msra.mxu0 %v855
        %897 = vmatprep.subr.mxu0 0.0
        %898 = vmatpush1.msra.mxu0 %v854
        %899 = vmatprep.subr.mxu0 0.0
        %900 = vmatpush1.msra.mxu0 %v853
        %901 = vmatprep.subr.mxu0 0.0
        %902 = vmatpush2.msra.mxu0 0.0
        %903 = vmatprep.subr.mxu0 0.0
        %904 = vmatpush2.msra.mxu0 0.0
        %905 = vmatprep.subr.mxu0 0.0
        %906 = vmatpush2.msra.mxu0 0.0
        %907 = vmatprep.subr.mxu0 0.0
        %908 = vmatpush2.msra.mxu0 0.0
        %909 = vmatprep.subr.mxu0 0.0
        %910 = vmatpush2.msra.mxu0 0.0
        %911 = vmatprep.subr.mxu0 0.0
        %912 = vmatpush2.msra.mxu0 0.0
        %913 = vmatprep.subr.mxu0 0.0
        %914 = vmatpush2.msra.mxu0 0.0
        %915 = vmatprep.subr.mxu0 0.0
        %916 = vmatpush2.msra.mxu0 0.0
        %917 = vmatprep.subr.mxu0 0.0
        %918 = vmatpush2.msra.mxu0 0.0
        %919 = vmatprep.subr.mxu0 0.0
        %920 = vmatpush2.msra.mxu0 0.0
        %921 = vmatprep.subr.mxu0 0.0
        %922 = vmatpush2.msra.mxu0 0.0
        %923 = vmatprep.subr.mxu0 0.0
        %924 = vmatpush2.msra.mxu0 0.0
        %925 = vmatprep.subr.mxu0 0.0
        %926 = vmatpush2.msra.mxu0 0.0
        %927 = vmatprep.subr.mxu0 0.0
        %928 = vmatpush2.msra.mxu0 0.0
        %929 = vmatprep.subr.mxu0 0.0
        %930 = vmatpush2.msra.mxu0 0.0
        %931 = vmatprep.subr.mxu0 0.0
        %932 = vmatpush2.msra.mxu0 0.0
        %933 = vmatprep.mubr.f32.mxu0 0.0
        %934 = vmatmul.mubr.f32.gmra.mxu0 %v844
        %v935 = vpop.f32.mrf.mxu0
        %v936 = vadd.f32 0.0, %v935
        %v937 = vpop.f32.mrf.mxu0
        %938 = vmatprep.mubr.f32.mxu0 0.0
        %939 = vmatmul.mubr.f32.gmra.mxu0 %v845
        %v940 = vpop.f32.mrf.mxu0
        %v941 = vadd.f32 0.0, %v940
        %v942 = vpop.f32.mrf.mxu0
        %943 = vmatprep.mubr.f32.mxu0 0.0
        %944 = vmatmul.mubr.f32.gmra.mxu0 %v846
        %v945 = vpop.f32.mrf.mxu0
        %v946 = vadd.f32 0.0, %v945
        %v947 = vpop.f32.mrf.mxu0
        %948 = vmatprep.mubr.f32.mxu0 0.0
        %949 = vmatmul.mubr.f32.gmra.mxu0 %v847
        %v950 = vpop.f32.mrf.mxu0
        %v951 = vadd.f32 0.0, %v950
        %v952 = vpop.f32.mrf.mxu0
        %953 = vmatprep.mubr.f32.mxu0 0.0
        %954 = vmatmul.mubr.f32.gmra.mxu0 %v848
        %v955 = vpop.f32.mrf.mxu0
        %v956 = vadd.f32 0.0, %v955
        %v957 = vpop.f32.mrf.mxu0
        %958 = vmatprep.mubr.f32.mxu0 0.0
        %959 = vmatmul.mubr.f32.gmra.mxu0 %v849
        %v960 = vpop.f32.mrf.mxu0
        %v961 = vadd.f32 0.0, %v960
        %v962 = vpop.f32.mrf.mxu0
        %963 = vmatprep.mubr.f32.mxu0 0.0
        %964 = vmatmul.mubr.f32.gmra.mxu0 %v850
        %v965 = vpop.f32.mrf.mxu0
        %v966 = vadd.f32 0.0, %v965
        %v967 = vpop.f32.mrf.mxu0
        %968 = vmatprep.mubr.f32.mxu0 0.0
        %969 = vmatmul.mubr.f32.gmra.mxu0 %v851
        %v970 = vpop.f32.mrf.mxu0
        %v971 = vadd.f32 0.0, %v970
        %v972 = vpop.f32.mrf.mxu0
        %973 = vdwg.mxu0
        %v974 = vadd.f32 %v819, %v936
        %v975 = vadd.f32 %v820, %v941
        %v976 = vadd.f32 %v821, %v946
        %v977 = vadd.f32 %v822, %v951
        %v978 = vadd.f32 %v823, %v956
        %v979 = vadd.f32 %v824, %v961
        %v980 = vadd.f32 %v825, %v966
        %v981 = vadd.f32 %v826, %v971
        %v982 = vsel %vm373, %v454, 0.0
        %v983 = vsel %vm374, %v453, 0.0
        %v984 = vsel %vm375, %v452, 0.0
        %v985 = vsel %vm376, %v451, 0.0
        %v986 = vsel %vm377, %v450, 0.0
        %v987 = vsel %vm378, %v449, 0.0
        %v988 = vsel %vm379, %v448, 0.0
        %v989 = vsel %vm380, %v447, 0.0
        %s990 = scalar_lea.vmem [#allocation9], 384
        %v991 = vld [vmem:[%s990] sm:$0xff]
        %v992 = vld [vmem:[%s990 + $0x8] sm:$0xff]
        %v993 = vld [vmem:[%s990 + $0x10] sm:$0xff]
        %v994 = vld [vmem:[%s990 + $0x18] sm:$0xff]
        %v995 = vld [vmem:[%s990 + $0x20] sm:$0xff]
        %v996 = vld [vmem:[%s990 + $0x28] sm:$0xff]
        %v997 = vld [vmem:[%s990 + $0x30] sm:$0xff]
        %v998 = vld [vmem:[%s990 + $0x38] sm:$0xff]
        %v999 = vld [vmem:[%s990 + $0x40] sm:$0xff]
        %v1000 = vld [vmem:[%s990 + $0x48] sm:$0xff]
        %v1001 = vld [vmem:[%s990 + $0x50] sm:$0xff]
        %v1002 = vld [vmem:[%s990 + $0x58] sm:$0xff]
        %v1003 = vld [vmem:[%s990 + $0x60] sm:$0xff]
        %v1004 = vld [vmem:[%s990 + $0x68] sm:$0xff]
        %v1005 = vld [vmem:[%s990 + $0x70] sm:$0xff]
        %v1006 = vld [vmem:[%s990 + $0x78] sm:$0xff]
        %1007 = vmatprep.subr.mxu0 0.0
        %1008 = vmatpush1.msra.mxu0 %v1006
        %1009 = vmatprep.subr.mxu0 0.0
        %1010 = vmatpush1.msra.mxu0 %v1005
        %1011 = vmatprep.subr.mxu0 0.0
        %1012 = vmatpush1.msra.mxu0 %v1004
        %1013 = vmatprep.subr.mxu0 0.0
        %1014 = vmatpush1.msra.mxu0 %v1003
        %1015 = vmatprep.subr.mxu0 0.0
        %1016 = vmatpush1.msra.mxu0 %v1002
        %1017 = vmatprep.subr.mxu0 0.0
        %1018 = vmatpush1.msra.mxu0 %v1001
        %1019 = vmatprep.subr.mxu0 0.0
        %1020 = vmatpush1.msra.mxu0 %v1000
        %1021 = vmatprep.subr.mxu0 0.0
        %1022 = vmatpush1.msra.mxu0 %v999
        %1023 = vmatprep.subr.mxu0 0.0
        %1024 = vmatpush1.msra.mxu0 %v998
        %1025 = vmatprep.subr.mxu0 0.0
        %1026 = vmatpush1.msra.mxu0 %v997
        %1027 = vmatprep.subr.mxu0 0.0
        %1028 = vmatpush1.msra.mxu0 %v996
        %1029 = vmatprep.subr.mxu0 0.0
        %1030 = vmatpush1.msra.mxu0 %v995
        %1031 = vmatprep.subr.mxu0 0.0
        %1032 = vmatpush1.msra.mxu0 %v994
        %1033 = vmatprep.subr.mxu0 0.0
        %1034 = vmatpush1.msra.mxu0 %v993
        %1035 = vmatprep.subr.mxu0 0.0
        %1036 = vmatpush1.msra.mxu0 %v992
        %1037 = vmatprep.subr.mxu0 0.0
        %1038 = vmatpush1.msra.mxu0 %v991
        %1039 = vmatprep.subr.mxu0 0.0
        %1040 = vmatpush2.msra.mxu0 0.0
        %1041 = vmatprep.subr.mxu0 0.0
        %1042 = vmatpush2.msra.mxu0 0.0
        %1043 = vmatprep.subr.mxu0 0.0
        %1044 = vmatpush2.msra.mxu0 0.0
        %1045 = vmatprep.subr.mxu0 0.0
        %1046 = vmatpush2.msra.mxu0 0.0
        %1047 = vmatprep.subr.mxu0 0.0
        %1048 = vmatpush2.msra.mxu0 0.0
        %1049 = vmatprep.subr.mxu0 0.0
        %1050 = vmatpush2.msra.mxu0 0.0
        %1051 = vmatprep.subr.mxu0 0.0
        %1052 = vmatpush2.msra.mxu0 0.0
        %1053 = vmatprep.subr.mxu0 0.0
        %1054 = vmatpush2.msra.mxu0 0.0
        %1055 = vmatprep.subr.mxu0 0.0
        %1056 = vmatpush2.msra.mxu0 0.0
        %1057 = vmatprep.subr.mxu0 0.0
        %1058 = vmatpush2.msra.mxu0 0.0
        %1059 = vmatprep.subr.mxu0 0.0
        %1060 = vmatpush2.msra.mxu0 0.0
        %1061 = vmatprep.subr.mxu0 0.0
        %1062 = vmatpush2.msra.mxu0 0.0
        %1063 = vmatprep.subr.mxu0 0.0
        %1064 = vmatpush2.msra.mxu0 0.0
        %1065 = vmatprep.subr.mxu0 0.0
        %1066 = vmatpush2.msra.mxu0 0.0
        %1067 = vmatprep.subr.mxu0 0.0
        %1068 = vmatpush2.msra.mxu0 0.0
        %1069 = vmatprep.subr.mxu0 0.0
        %1070 = vmatpush2.msra.mxu0 0.0
        %1071 = vmatprep.mubr.f32.mxu0 0.0
        %1072 = vmatmul.mubr.f32.gmra.mxu0 %v982
        %v1073 = vpop.f32.mrf.mxu0
        %v1074 = vadd.f32 0.0, %v1073
        %v1075 = vpop.f32.mrf.mxu0
        %1076 = vmatprep.mubr.f32.mxu0 0.0
        %1077 = vmatmul.mubr.f32.gmra.mxu0 %v983
        %v1078 = vpop.f32.mrf.mxu0
        %v1079 = vadd.f32 0.0, %v1078
        %v1080 = vpop.f32.mrf.mxu0
        %1081 = vmatprep.mubr.f32.mxu0 0.0
        %1082 = vmatmul.mubr.f32.gmra.mxu0 %v984
        %v1083 = vpop.f32.mrf.mxu0
        %v1084 = vadd.f32 0.0, %v1083
        %v1085 = vpop.f32.mrf.mxu0
        %1086 = vmatprep.mubr.f32.mxu0 0.0
        %1087 = vmatmul.mubr.f32.gmra.mxu0 %v985
        %v1088 = vpop.f32.mrf.mxu0
        %v1089 = vadd.f32 0.0, %v1088
        %v1090 = vpop.f32.mrf.mxu0
        %1091 = vmatprep.mubr.f32.mxu0 0.0
        %1092 = vmatmul.mubr.f32.gmra.mxu0 %v986
        %v1093 = vpop.f32.mrf.mxu0
        %v1094 = vadd.f32 0.0, %v1093
        %v1095 = vpop.f32.mrf.mxu0
        %1096 = vmatprep.mubr.f32.mxu0 0.0
        %1097 = vmatmul.mubr.f32.gmra.mxu0 %v987
        %v1098 = vpop.f32.mrf.mxu0
        %v1099 = vadd.f32 0.0, %v1098
        %v1100 = vpop.f32.mrf.mxu0
        %1101 = vmatprep.mubr.f32.mxu0 0.0
        %1102 = vmatmul.mubr.f32.gmra.mxu0 %v988
        %v1103 = vpop.f32.mrf.mxu0
        %v1104 = vadd.f32 0.0, %v1103
        %v1105 = vpop.f32.mrf.mxu0
        %1106 = vmatprep.mubr.f32.mxu0 0.0
        %1107 = vmatmul.mubr.f32.gmra.mxu0 %v989
        %v1108 = vpop.f32.mrf.mxu0
        %v1109 = vadd.f32 0.0, %v1108
        %v1110 = vpop.f32.mrf.mxu0
        %1111 = vdwg.mxu0
        %v1112 = vadd.f32 %v974, %v1074
        %v1113 = vadd.f32 %v975, %v1079
        %v1114 = vadd.f32 %v976, %v1084
        %v1115 = vadd.f32 %v977, %v1089
        %v1116 = vadd.f32 %v978, %v1094
        %v1117 = vadd.f32 %v979, %v1099
        %v1118 = vadd.f32 %v980, %v1104
        %v1119 = vadd.f32 %v981, %v1109
        %v1120 = vsel %vm381, %v842, 0.0
        %v1121 = vsel %vm382, %v841, 0.0
        %v1122 = vsel %vm383, %v840, 0.0
        %v1123 = vsel %vm384, %v839, 0.0
        %v1124 = vsel %vm385, %v838, 0.0
        %v1125 = vsel %vm386, %v837, 0.0
        %v1126 = vsel %vm387, %v836, 0.0
        %v1127 = vsel %vm388, %v843, 0.0
        %s1128 = scalar_lea.vmem [#allocation9], 640
        %v1129 = vld [vmem:[%s1128] sm:$0xff]
        %v1130 = vld [vmem:[%s1128 + $0x8] sm:$0xff]
        %v1131 = vld [vmem:[%s1128 + $0x10] sm:$0xff]
        %v1132 = vld [vmem:[%s1128 + $0x18] sm:$0xff]
        %v1133 = vld [vmem:[%s1128 + $0x20] sm:$0xff]
        %v1134 = vld [vmem:[%s1128 + $0x28] sm:$0xff]
        %v1135 = vld [vmem:[%s1128 + $0x30] sm:$0xff]
        %v1136 = vld [vmem:[%s1128 + $0x38] sm:$0xff]
        %v1137 = vld [vmem:[%s1128 + $0x40] sm:$0xff]
        %v1138 = vld [vmem:[%s1128 + $0x48] sm:$0xff]
        %v1139 = vld [vmem:[%s1128 + $0x50] sm:$0xff]
        %v1140 = vld [vmem:[%s1128 + $0x58] sm:$0xff]
        %v1141 = vld [vmem:[%s1128 + $0x60] sm:$0xff]
        %v1142 = vld [vmem:[%s1128 + $0x68] sm:$0xff]
        %v1143 = vld [vmem:[%s1128 + $0x70] sm:$0xff]
        %v1144 = vld [vmem:[%s1128 + $0x78] sm:$0xff]
        %1145 = vmatprep.subr.mxu0 0.0
        %1146 = vmatpush1.msra.mxu0 %v1144
        %1147 = vmatprep.subr.mxu0 0.0
        %1148 = vmatpush1.msra.mxu0 %v1143
        %1149 = vmatprep.subr.mxu0 0.0
        %1150 = vmatpush1.msra.mxu0 %v1142
        %1151 = vmatprep.subr.mxu0 0.0
        %1152 = vmatpush1.msra.mxu0 %v1141
        %1153 = vmatprep.subr.mxu0 0.0
        %1154 = vmatpush1.msra.mxu0 %v1140
        %1155 = vmatprep.subr.mxu0 0.0
        %1156 = vmatpush1.msra.mxu0 %v1139
        %1157 = vmatprep.subr.mxu0 0.0
        %1158 = vmatpush1.msra.mxu0 %v1138
        %1159 = vmatprep.subr.mxu0 0.0
        %1160 = vmatpush1.msra.mxu0 %v1137
        %1161 = vmatprep.subr.mxu0 0.0
        %1162 = vmatpush1.msra.mxu0 %v1136
        %1163 = vmatprep.subr.mxu0 0.0
        %1164 = vmatpush1.msra.mxu0 %v1135
        %1165 = vmatprep.subr.mxu0 0.0
        %1166 = vmatpush1.msra.mxu0 %v1134
        %1167 = vmatprep.subr.mxu0 0.0
        %1168 = vmatpush1.msra.mxu0 %v1133
        %1169 = vmatprep.subr.mxu0 0.0
        %1170 = vmatpush1.msra.mxu0 %v1132
        %1171 = vmatprep.subr.mxu0 0.0
        %1172 = vmatpush1.msra.mxu0 %v1131
        %1173 = vmatprep.subr.mxu0 0.0
        %1174 = vmatpush1.msra.mxu0 %v1130
        %1175 = vmatprep.subr.mxu0 0.0
        %1176 = vmatpush1.msra.mxu0 %v1129
        %1177 = vmatprep.subr.mxu0 0.0
        %1178 = vmatpush2.msra.mxu0 0.0
        %1179 = vmatprep.subr.mxu0 0.0
        %1180 = vmatpush2.msra.mxu0 0.0
        %1181 = vmatprep.subr.mxu0 0.0
        %1182 = vmatpush2.msra.mxu0 0.0
        %1183 = vmatprep.subr.mxu0 0.0
        %1184 = vmatpush2.msra.mxu0 0.0
        %1185 = vmatprep.subr.mxu0 0.0
        %1186 = vmatpush2.msra.mxu0 0.0
        %1187 = vmatprep.subr.mxu0 0.0
        %1188 = vmatpush2.msra.mxu0 0.0
        %1189 = vmatprep.subr.mxu0 0.0
        %1190 = vmatpush2.msra.mxu0 0.0
        %1191 = vmatprep.subr.mxu0 0.0
        %1192 = vmatpush2.msra.mxu0 0.0
        %1193 = vmatprep.subr.mxu0 0.0
        %1194 = vmatpush2.msra.mxu0 0.0
        %1195 = vmatprep.subr.mxu0 0.0
        %1196 = vmatpush2.msra.mxu0 0.0
        %1197 = vmatprep.subr.mxu0 0.0
        %1198 = vmatpush2.msra.mxu0 0.0
        %1199 = vmatprep.subr.mxu0 0.0
        %1200 = vmatpush2.msra.mxu0 0.0
        %1201 = vmatprep.subr.mxu0 0.0
        %1202 = vmatpush2.msra.mxu0 0.0
        %1203 = vmatprep.subr.mxu0 0.0
        %1204 = vmatpush2.msra.mxu0 0.0
        %1205 = vmatprep.subr.mxu0 0.0
        %1206 = vmatpush2.msra.mxu0 0.0
        %1207 = vmatprep.subr.mxu0 0.0
        %1208 = vmatpush2.msra.mxu0 0.0
        %1209 = vmatprep.mubr.f32.mxu0 0.0
        %1210 = vmatmul.mubr.f32.gmra.mxu0 %v1120
        %v1211 = vpop.f32.mrf.mxu0
        %v1212 = vadd.f32 0.0, %v1211
        %v1213 = vpop.f32.mrf.mxu0
        %1214 = vmatprep.mubr.f32.mxu0 0.0
        %1215 = vmatmul.mubr.f32.gmra.mxu0 %v1121
        %v1216 = vpop.f32.mrf.mxu0
        %v1217 = vadd.f32 0.0, %v1216
        %v1218 = vpop.f32.mrf.mxu0
        %1219 = vmatprep.mubr.f32.mxu0 0.0
        %1220 = vmatmul.mubr.f32.gmra.mxu0 %v1122
        %v1221 = vpop.f32.mrf.mxu0
        %v1222 = vadd.f32 0.0, %v1221
        %v1223 = vpop.f32.mrf.mxu0
        %1224 = vmatprep.mubr.f32.mxu0 0.0
        %1225 = vmatmul.mubr.f32.gmra.mxu0 %v1123
        %v1226 = vpop.f32.mrf.mxu0
        %v1227 = vadd.f32 0.0, %v1226
        %v1228 = vpop.f32.mrf.mxu0
        %1229 = vmatprep.mubr.f32.mxu0 0.0
        %1230 = vmatmul.mubr.f32.gmra.mxu0 %v1124
        %v1231 = vpop.f32.mrf.mxu0
        %v1232 = vadd.f32 0.0, %v1231
        %v1233 = vpop.f32.mrf.mxu0
        %1234 = vmatprep.mubr.f32.mxu0 0.0
        %1235 = vmatmul.mubr.f32.gmra.mxu0 %v1125
        %v1236 = vpop.f32.mrf.mxu0
        %v1237 = vadd.f32 0.0, %v1236
        %v1238 = vpop.f32.mrf.mxu0
        %1239 = vmatprep.mubr.f32.mxu0 0.0
        %1240 = vmatmul.mubr.f32.gmra.mxu0 %v1126
        %v1241 = vpop.f32.mrf.mxu0
        %v1242 = vadd.f32 0.0, %v1241
        %v1243 = vpop.f32.mrf.mxu0
        %1244 = vmatprep.mubr.f32.mxu0 0.0
        %1245 = vmatmul.mubr.f32.gmra.mxu0 %v1127
        %v1246 = vpop.f32.mrf.mxu0
        %v1247 = vadd.f32 0.0, %v1246
        %v1248 = vpop.f32.mrf.mxu0
        %1249 = vdwg.mxu0
        %v1250 = vadd.f32 %v1112, %v1212
        %v1251 = vadd.f32 %v1113, %v1217
        %v1252 = vadd.f32 %v1114, %v1222
        %v1253 = vadd.f32 %v1115, %v1227
        %v1254 = vadd.f32 %v1116, %v1232
        %v1255 = vadd.f32 %v1117, %v1237
        %v1256 = vadd.f32 %v1118, %v1242
        %v1257 = vadd.f32 %v1119, %v1247
        %v1258 = vsel %vm405, %v453, 0.0
        %v1259 = vsel %vm406, %v452, 0.0
        %v1260 = vsel %vm407, %v451, 0.0
        %v1261 = vsel %vm408, %v450, 0.0
        %v1262 = vsel %vm409, %v449, 0.0
        %v1263 = vsel %vm410, %v448, 0.0
        %v1264 = vsel %vm411, %v447, 0.0
        %v1265 = vsel %vm412, %v454, 0.0
        %s1266 = scalar_lea.vmem [#allocation9], 768
        %v1267 = vld [vmem:[%s1266] sm:$0xff]
        %v1268 = vld [vmem:[%s1266 + $0x8] sm:$0xff]
        %v1269 = vld [vmem:[%s1266 + $0x10] sm:$0xff]
        %v1270 = vld [vmem:[%s1266 + $0x18] sm:$0xff]
        %v1271 = vld [vmem:[%s1266 + $0x20] sm:$0xff]
        %v1272 = vld [vmem:[%s1266 + $0x28] sm:$0xff]
        %v1273 = vld [vmem:[%s1266 + $0x30] sm:$0xff]
        %v1274 = vld [vmem:[%s1266 + $0x38] sm:$0xff]
        %v1275 = vld [vmem:[%s1266 + $0x40] sm:$0xff]
        %v1276 = vld [vmem:[%s1266 + $0x48] sm:$0xff]
        %v1277 = vld [vmem:[%s1266 + $0x50] sm:$0xff]
        %v1278 = vld [vmem:[%s1266 + $0x58] sm:$0xff]
        %v1279 = vld [vmem:[%s1266 + $0x60] sm:$0xff]
        %v1280 = vld [vmem:[%s1266 + $0x68] sm:$0xff]
        %v1281 = vld [vmem:[%s1266 + $0x70] sm:$0xff]
        %v1282 = vld [vmem:[%s1266 + $0x78] sm:$0xff]
        %1283 = vmatprep.subr.mxu0 0.0
        %1284 = vmatpush1.msra.mxu0 %v1282
        %1285 = vmatprep.subr.mxu0 0.0
        %1286 = vmatpush1.msra.mxu0 %v1281
        %1287 = vmatprep.subr.mxu0 0.0
        %1288 = vmatpush1.msra.mxu0 %v1280
        %1289 = vmatprep.subr.mxu0 0.0
        %1290 = vmatpush1.msra.mxu0 %v1279
        %1291 = vmatprep.subr.mxu0 0.0
        %1292 = vmatpush1.msra.mxu0 %v1278
        %1293 = vmatprep.subr.mxu0 0.0
        %1294 = vmatpush1.msra.mxu0 %v1277
        %1295 = vmatprep.subr.mxu0 0.0
        %1296 = vmatpush1.msra.mxu0 %v1276
        %1297 = vmatprep.subr.mxu0 0.0
        %1298 = vmatpush1.msra.mxu0 %v1275
        %1299 = vmatprep.subr.mxu0 0.0
        %1300 = vmatpush1.msra.mxu0 %v1274
        %1301 = vmatprep.subr.mxu0 0.0
        %1302 = vmatpush1.msra.mxu0 %v1273
        %1303 = vmatprep.subr.mxu0 0.0
        %1304 = vmatpush1.msra.mxu0 %v1272
        %1305 = vmatprep.subr.mxu0 0.0
        %1306 = vmatpush1.msra.mxu0 %v1271
        %1307 = vmatprep.subr.mxu0 0.0
        %1308 = vmatpush1.msra.mxu0 %v1270
        %1309 = vmatprep.subr.mxu0 0.0
        %1310 = vmatpush1.msra.mxu0 %v1269
        %1311 = vmatprep.subr.mxu0 0.0
        %1312 = vmatpush1.msra.mxu0 %v1268
        %1313 = vmatprep.subr.mxu0 0.0
        %1314 = vmatpush1.msra.mxu0 %v1267
        %1315 = vmatprep.subr.mxu0 0.0
        %1316 = vmatpush2.msra.mxu0 0.0
        %1317 = vmatprep.subr.mxu0 0.0
        %1318 = vmatpush2.msra.mxu0 0.0
        %1319 = vmatprep.subr.mxu0 0.0
        %1320 = vmatpush2.msra.mxu0 0.0
        %1321 = vmatprep.subr.mxu0 0.0
        %1322 = vmatpush2.msra.mxu0 0.0
        %1323 = vmatprep.subr.mxu0 0.0
        %1324 = vmatpush2.msra.mxu0 0.0
        %1325 = vmatprep.subr.mxu0 0.0
        %1326 = vmatpush2.msra.mxu0 0.0
        %1327 = vmatprep.subr.mxu0 0.0
        %1328 = vmatpush2.msra.mxu0 0.0
        %1329 = vmatprep.subr.mxu0 0.0
        %1330 = vmatpush2.msra.mxu0 0.0
        %1331 = vmatprep.subr.mxu0 0.0
        %1332 = vmatpush2.msra.mxu0 0.0
        %1333 = vmatprep.subr.mxu0 0.0
        %1334 = vmatpush2.msra.mxu0 0.0
        %1335 = vmatprep.subr.mxu0 0.0
        %1336 = vmatpush2.msra.mxu0 0.0
        %1337 = vmatprep.subr.mxu0 0.0
        %1338 = vmatpush2.msra.mxu0 0.0
        %1339 = vmatprep.subr.mxu0 0.0
        %1340 = vmatpush2.msra.mxu0 0.0
        %1341 = vmatprep.subr.mxu0 0.0
        %1342 = vmatpush2.msra.mxu0 0.0
        %1343 = vmatprep.subr.mxu0 0.0
        %1344 = vmatpush2.msra.mxu0 0.0
        %1345 = vmatprep.subr.mxu0 0.0
        %1346 = vmatpush2.msra.mxu0 0.0
        %1347 = vmatprep.mubr.f32.mxu0 0.0
        %1348 = vmatmul.mubr.f32.gmra.mxu0 %v1258
        %v1349 = vpop.f32.mrf.mxu0
        %v1350 = vadd.f32 0.0, %v1349
        %v1351 = vpop.f32.mrf.mxu0
        %1352 = vmatprep.mubr.f32.mxu0 0.0
        %1353 = vmatmul.mubr.f32.gmra.mxu0 %v1259
        %v1354 = vpop.f32.mrf.mxu0
        %v1355 = vadd.f32 0.0, %v1354
        %v1356 = vpop.f32.mrf.mxu0
        %1357 = vmatprep.mubr.f32.mxu0 0.0
        %1358 = vmatmul.mubr.f32.gmra.mxu0 %v1260
        %v1359 = vpop.f32.mrf.mxu0
        %v1360 = vadd.f32 0.0, %v1359
        %v1361 = vpop.f32.mrf.mxu0
        %1362 = vmatprep.mubr.f32.mxu0 0.0
        %1363 = vmatmul.mubr.f32.gmra.mxu0 %v1261
        %v1364 = vpop.f32.mrf.mxu0
        %v1365 = vadd.f32 0.0, %v1364
        %v1366 = vpop.f32.mrf.mxu0
        %1367 = vmatprep.mubr.f32.mxu0 0.0
        %1368 = vmatmul.mubr.f32.gmra.mxu0 %v1262
        %v1369 = vpop.f32.mrf.mxu0
        %v1370 = vadd.f32 0.0, %v1369
        %v1371 = vpop.f32.mrf.mxu0
        %1372 = vmatprep.mubr.f32.mxu0 0.0
        %1373 = vmatmul.mubr.f32.gmra.mxu0 %v1263
        %v1374 = vpop.f32.mrf.mxu0
        %v1375 = vadd.f32 0.0, %v1374
        %v1376 = vpop.f32.mrf.mxu0
        %1377 = vmatprep.mubr.f32.mxu0 0.0
        %1378 = vmatmul.mubr.f32.gmra.mxu0 %v1264
        %v1379 = vpop.f32.mrf.mxu0
        %v1380 = vadd.f32 0.0, %v1379
        %v1381 = vpop.f32.mrf.mxu0
        %1382 = vmatprep.mubr.f32.mxu0 0.0
        %1383 = vmatmul.mubr.f32.gmra.mxu0 %v1265
        %v1384 = vpop.f32.mrf.mxu0
        %v1385 = vadd.f32 0.0, %v1384
        %v1386 = vpop.f32.mrf.mxu0
        %1387 = vdwg.mxu0
        %v1388 = vadd.f32 %v1250, %v1350
        %v1389 = vadd.f32 %v1251, %v1355
        %v1390 = vadd.f32 %v1252, %v1360
        %v1391 = vadd.f32 %v1253, %v1365
        %v1392 = vadd.f32 %v1254, %v1370
        %v1393 = vadd.f32 %v1255, %v1375
        %v1394 = vadd.f32 %v1256, %v1380
        %v1395 = vadd.f32 %v1257, %v1385
        %v1396 = vsel %vm365, %v245, 0.0
        %v1397 = vsel %vm366, %v246, 0.0
        %v1398 = vsel %vm367, %v247, 0.0
        %v1399 = vsel %vm368, %v248, 0.0
        %v1400 = vsel %vm369, %v249, 0.0
        %v1401 = vsel %vm370, %v250, 0.0
        %v1402 = vsel %vm371, %v251, 0.0
        %v1403 = vsel %vm372, %v244, 0.0
        %s1404 = scalar_lea.vmem [#allocation9], 896
        %v1405 = vld [vmem:[%s1404] sm:$0xff]
        %v1406 = vld [vmem:[%s1404 + $0x8] sm:$0xff]
        %v1407 = vld [vmem:[%s1404 + $0x10] sm:$0xff]
        %v1408 = vld [vmem:[%s1404 + $0x18] sm:$0xff]
        %v1409 = vld [vmem:[%s1404 + $0x20] sm:$0xff]
        %v1410 = vld [vmem:[%s1404 + $0x28] sm:$0xff]
        %v1411 = vld [vmem:[%s1404 + $0x30] sm:$0xff]
        %v1412 = vld [vmem:[%s1404 + $0x38] sm:$0xff]
        %v1413 = vld [vmem:[%s1404 + $0x40] sm:$0xff]
        %v1414 = vld [vmem:[%s1404 + $0x48] sm:$0xff]
        %v1415 = vld [vmem:[%s1404 + $0x50] sm:$0xff]
        %v1416 = vld [vmem:[%s1404 + $0x58] sm:$0xff]
        %v1417 = vld [vmem:[%s1404 + $0x60] sm:$0xff]
        %v1418 = vld [vmem:[%s1404 + $0x68] sm:$0xff]
        %v1419 = vld [vmem:[%s1404 + $0x70] sm:$0xff]
        %v1420 = vld [vmem:[%s1404 + $0x78] sm:$0xff]
        %1421 = vmatprep.subr.mxu0 0.0
        %1422 = vmatpush1.msra.mxu0 %v1420
        %1423 = vmatprep.subr.mxu0 0.0
        %1424 = vmatpush1.msra.mxu0 %v1419
        %1425 = vmatprep.subr.mxu0 0.0
        %1426 = vmatpush1.msra.mxu0 %v1418
        %1427 = vmatprep.subr.mxu0 0.0
        %1428 = vmatpush1.msra.mxu0 %v1417
        %1429 = vmatprep.subr.mxu0 0.0
        %1430 = vmatpush1.msra.mxu0 %v1416
        %1431 = vmatprep.subr.mxu0 0.0
        %1432 = vmatpush1.msra.mxu0 %v1415
        %1433 = vmatprep.subr.mxu0 0.0
        %1434 = vmatpush1.msra.mxu0 %v1414
        %1435 = vmatprep.subr.mxu0 0.0
        %1436 = vmatpush1.msra.mxu0 %v1413
        %1437 = vmatprep.subr.mxu0 0.0
        %1438 = vmatpush1.msra.mxu0 %v1412
        %1439 = vmatprep.subr.mxu0 0.0
        %1440 = vmatpush1.msra.mxu0 %v1411
        %1441 = vmatprep.subr.mxu0 0.0
        %1442 = vmatpush1.msra.mxu0 %v1410
        %1443 = vmatprep.subr.mxu0 0.0
        %1444 = vmatpush1.msra.mxu0 %v1409
        %1445 = vmatprep.subr.mxu0 0.0
        %1446 = vmatpush1.msra.mxu0 %v1408
        %1447 = vmatprep.subr.mxu0 0.0
        %1448 = vmatpush1.msra.mxu0 %v1407
        %1449 = vmatprep.subr.mxu0 0.0
        %1450 = vmatpush1.msra.mxu0 %v1406
        %1451 = vmatprep.subr.mxu0 0.0
        %1452 = vmatpush1.msra.mxu0 %v1405
        %1453 = vmatprep.subr.mxu0 0.0
        %1454 = vmatpush2.msra.mxu0 0.0
        %1455 = vmatprep.subr.mxu0 0.0
        %1456 = vmatpush2.msra.mxu0 0.0
        %1457 = vmatprep.subr.mxu0 0.0
        %1458 = vmatpush2.msra.mxu0 0.0
        %1459 = vmatprep.subr.mxu0 0.0
        %1460 = vmatpush2.msra.mxu0 0.0
        %1461 = vmatprep.subr.mxu0 0.0
        %1462 = vmatpush2.msra.mxu0 0.0
        %1463 = vmatprep.subr.mxu0 0.0
        %1464 = vmatpush2.msra.mxu0 0.0
        %1465 = vmatprep.subr.mxu0 0.0
        %1466 = vmatpush2.msra.mxu0 0.0
        %1467 = vmatprep.subr.mxu0 0.0
        %1468 = vmatpush2.msra.mxu0 0.0
        %1469 = vmatprep.subr.mxu0 0.0
        %1470 = vmatpush2.msra.mxu0 0.0
        %1471 = vmatprep.subr.mxu0 0.0
        %1472 = vmatpush2.msra.mxu0 0.0
        %1473 = vmatprep.subr.mxu0 0.0
        %1474 = vmatpush2.msra.mxu0 0.0
        %1475 = vmatprep.subr.mxu0 0.0
        %1476 = vmatpush2.msra.mxu0 0.0
        %1477 = vmatprep.subr.mxu0 0.0
        %1478 = vmatpush2.msra.mxu0 0.0
        %1479 = vmatprep.subr.mxu0 0.0
        %1480 = vmatpush2.msra.mxu0 0.0
        %1481 = vmatprep.subr.mxu0 0.0
        %1482 = vmatpush2.msra.mxu0 0.0
        %1483 = vmatprep.subr.mxu0 0.0
        %1484 = vmatpush2.msra.mxu0 0.0
        %1485 = vmatprep.mubr.f32.mxu0 0.0
        %1486 = vmatmul.mubr.f32.gmra.mxu0 %v1396
        %v1487 = vpop.f32.mrf.mxu0
        %v1488 = vadd.f32 0.0, %v1487
        %v1489 = vpop.f32.mrf.mxu0
        %1490 = vmatprep.mubr.f32.mxu0 0.0
        %1491 = vmatmul.mubr.f32.gmra.mxu0 %v1397
        %v1492 = vpop.f32.mrf.mxu0
        %v1493 = vadd.f32 0.0, %v1492
        %v1494 = vpop.f32.mrf.mxu0
        %1495 = vmatprep.mubr.f32.mxu0 0.0
        %1496 = vmatmul.mubr.f32.gmra.mxu0 %v1398
        %v1497 = vpop.f32.mrf.mxu0
        %v1498 = vadd.f32 0.0, %v1497
        %v1499 = vpop.f32.mrf.mxu0
        %1500 = vmatprep.mubr.f32.mxu0 0.0
        %1501 = vmatmul.mubr.f32.gmra.mxu0 %v1399
        %v1502 = vpop.f32.mrf.mxu0
        %v1503 = vadd.f32 0.0, %v1502
        %v1504 = vpop.f32.mrf.mxu0
        %1505 = vmatprep.mubr.f32.mxu0 0.0
        %1506 = vmatmul.mubr.f32.gmra.mxu0 %v1400
        %v1507 = vpop.f32.mrf.mxu0
        %v1508 = vadd.f32 0.0, %v1507
        %v1509 = vpop.f32.mrf.mxu0
        %1510 = vmatprep.mubr.f32.mxu0 0.0
        %1511 = vmatmul.mubr.f32.gmra.mxu0 %v1401
        %v1512 = vpop.f32.mrf.mxu0
        %v1513 = vadd.f32 0.0, %v1512
        %v1514 = vpop.f32.mrf.mxu0
        %1515 = vmatprep.mubr.f32.mxu0 0.0
        %1516 = vmatmul.mubr.f32.gmra.mxu0 %v1402
        %v1517 = vpop.f32.mrf.mxu0
        %v1518 = vadd.f32 0.0, %v1517
        %v1519 = vpop.f32.mrf.mxu0
        %1520 = vmatprep.mubr.f32.mxu0 0.0
        %1521 = vmatmul.mubr.f32.gmra.mxu0 %v1403
        %v1522 = vpop.f32.mrf.mxu0
        %v1523 = vadd.f32 0.0, %v1522
        %v1524 = vpop.f32.mrf.mxu0
        %1525 = vdwg.mxu0
        %v1526 = vadd.f32 %v1388, %v1488
        %v1527 = vadd.f32 %v1389, %v1493
        %v1528 = vadd.f32 %v1390, %v1498
        %v1529 = vadd.f32 %v1391, %v1503
        %v1530 = vadd.f32 %v1392, %v1508
        %v1531 = vadd.f32 %v1393, %v1513
        %v1532 = vadd.f32 %v1394, %v1518
        %v1533 = vadd.f32 %v1395, %v1523
        %v1534 = vsel %vm413, %v841, 0.0
        %v1535 = vsel %vm414, %v840, 0.0
        %v1536 = vsel %vm415, %v839, 0.0
        %v1537 = vsel %vm416, %v838, 0.0
        %v1538 = vsel %vm417, %v837, 0.0
        %v1539 = vsel %vm418, %v836, 0.0
        %v1540 = vsel %vm419, %v843, 0.0
        %v1541 = vsel %vm420, %v842, 0.0
        %s1542 = scalar_lea.vmem [#allocation9], 1024
        %v1543 = vld [vmem:[%s1542] sm:$0xff]
        %v1544 = vld [vmem:[%s1542 + $0x8] sm:$0xff]
        %v1545 = vld [vmem:[%s1542 + $0x10] sm:$0xff]
        %v1546 = vld [vmem:[%s1542 + $0x18] sm:$0xff]
        %v1547 = vld [vmem:[%s1542 + $0x20] sm:$0xff]
        %v1548 = vld [vmem:[%s1542 + $0x28] sm:$0xff]
        %v1549 = vld [vmem:[%s1542 + $0x30] sm:$0xff]
        %v1550 = vld [vmem:[%s1542 + $0x38] sm:$0xff]
        %v1551 = vld [vmem:[%s1542 + $0x40] sm:$0xff]
        %v1552 = vld [vmem:[%s1542 + $0x48] sm:$0xff]
        %v1553 = vld [vmem:[%s1542 + $0x50] sm:$0xff]
        %v1554 = vld [vmem:[%s1542 + $0x58] sm:$0xff]
        %v1555 = vld [vmem:[%s1542 + $0x60] sm:$0xff]
        %v1556 = vld [vmem:[%s1542 + $0x68] sm:$0xff]
        %v1557 = vld [vmem:[%s1542 + $0x70] sm:$0xff]
        %v1558 = vld [vmem:[%s1542 + $0x78] sm:$0xff]
        %1559 = vmatprep.subr.mxu0 0.0
        %1560 = vmatpush1.msra.mxu0 %v1558
        %1561 = vmatprep.subr.mxu0 0.0
        %1562 = vmatpush1.msra.mxu0 %v1557
        %1563 = vmatprep.subr.mxu0 0.0
        %1564 = vmatpush1.msra.mxu0 %v1556
        %1565 = vmatprep.subr.mxu0 0.0
        %1566 = vmatpush1.msra.mxu0 %v1555
        %1567 = vmatprep.subr.mxu0 0.0
        %1568 = vmatpush1.msra.mxu0 %v1554
        %1569 = vmatprep.subr.mxu0 0.0
        %1570 = vmatpush1.msra.mxu0 %v1553
        %1571 = vmatprep.subr.mxu0 0.0
        %1572 = vmatpush1.msra.mxu0 %v1552
        %1573 = vmatprep.subr.mxu0 0.0
        %1574 = vmatpush1.msra.mxu0 %v1551
        %1575 = vmatprep.subr.mxu0 0.0
        %1576 = vmatpush1.msra.mxu0 %v1550
        %1577 = vmatprep.subr.mxu0 0.0
        %1578 = vmatpush1.msra.mxu0 %v1549
        %1579 = vmatprep.subr.mxu0 0.0
        %1580 = vmatpush1.msra.mxu0 %v1548
        %1581 = vmatprep.subr.mxu0 0.0
        %1582 = vmatpush1.msra.mxu0 %v1547
        %1583 = vmatprep.subr.mxu0 0.0
        %1584 = vmatpush1.msra.mxu0 %v1546
        %1585 = vmatprep.subr.mxu0 0.0
        %1586 = vmatpush1.msra.mxu0 %v1545
        %1587 = vmatprep.subr.mxu0 0.0
        %1588 = vmatpush1.msra.mxu0 %v1544
        %1589 = vmatprep.subr.mxu0 0.0
        %1590 = vmatpush1.msra.mxu0 %v1543
        %1591 = vmatprep.subr.mxu0 0.0
        %1592 = vmatpush2.msra.mxu0 0.0
        %1593 = vmatprep.subr.mxu0 0.0
        %1594 = vmatpush2.msra.mxu0 0.0
        %1595 = vmatprep.subr.mxu0 0.0
        %1596 = vmatpush2.msra.mxu0 0.0
        %1597 = vmatprep.subr.mxu0 0.0
        %1598 = vmatpush2.msra.mxu0 0.0
        %1599 = vmatprep.subr.mxu0 0.0
        %1600 = vmatpush2.msra.mxu0 0.0
        %1601 = vmatprep.subr.mxu0 0.0
        %1602 = vmatpush2.msra.mxu0 0.0
        %1603 = vmatprep.subr.mxu0 0.0
        %1604 = vmatpush2.msra.mxu0 0.0
        %1605 = vmatprep.subr.mxu0 0.0
        %1606 = vmatpush2.msra.mxu0 0.0
        %1607 = vmatprep.subr.mxu0 0.0
        %1608 = vmatpush2.msra.mxu0 0.0
        %1609 = vmatprep.subr.mxu0 0.0
        %1610 = vmatpush2.msra.mxu0 0.0
        %1611 = vmatprep.subr.mxu0 0.0
        %1612 = vmatpush2.msra.mxu0 0.0
        %1613 = vmatprep.subr.mxu0 0.0
        %1614 = vmatpush2.msra.mxu0 0.0
        %1615 = vmatprep.subr.mxu0 0.0
        %1616 = vmatpush2.msra.mxu0 0.0
        %1617 = vmatprep.subr.mxu0 0.0
        %1618 = vmatpush2.msra.mxu0 0.0
        %1619 = vmatprep.subr.mxu0 0.0
        %1620 = vmatpush2.msra.mxu0 0.0
        %1621 = vmatprep.subr.mxu0 0.0
        %1622 = vmatpush2.msra.mxu0 0.0
        %1623 = vmatprep.mubr.f32.mxu0 0.0
        %1624 = vmatmul.mubr.f32.gmra.mxu0 %v1534
        %v1625 = vpop.f32.mrf.mxu0
        %v1626 = vadd.f32 0.0, %v1625
        %v1627 = vpop.f32.mrf.mxu0
        %1628 = vmatprep.mubr.f32.mxu0 0.0
        %1629 = vmatmul.mubr.f32.gmra.mxu0 %v1535
        %v1630 = vpop.f32.mrf.mxu0
        %v1631 = vadd.f32 0.0, %v1630
        %v1632 = vpop.f32.mrf.mxu0
        %1633 = vmatprep.mubr.f32.mxu0 0.0
        %1634 = vmatmul.mubr.f32.gmra.mxu0 %v1536
        %v1635 = vpop.f32.mrf.mxu0
        %v1636 = vadd.f32 0.0, %v1635
        %v1637 = vpop.f32.mrf.mxu0
        %1638 = vmatprep.mubr.f32.mxu0 0.0
        %1639 = vmatmul.mubr.f32.gmra.mxu0 %v1537
        %v1640 = vpop.f32.mrf.mxu0
        %v1641 = vadd.f32 0.0, %v1640
        %v1642 = vpop.f32.mrf.mxu0
        %1643 = vmatprep.mubr.f32.mxu0 0.0
        %1644 = vmatmul.mubr.f32.gmra.mxu0 %v1538
        %v1645 = vpop.f32.mrf.mxu0
        %v1646 = vadd.f32 0.0, %v1645
        %v1647 = vpop.f32.mrf.mxu0
        %1648 = vmatprep.mubr.f32.mxu0 0.0
        %1649 = vmatmul.mubr.f32.gmra.mxu0 %v1539
        %v1650 = vpop.f32.mrf.mxu0
        %v1651 = vadd.f32 0.0, %v1650
        %v1652 = vpop.f32.mrf.mxu0
        %1653 = vmatprep.mubr.f32.mxu0 0.0
        %1654 = vmatmul.mubr.f32.gmra.mxu0 %v1540
        %v1655 = vpop.f32.mrf.mxu0
        %v1656 = vadd.f32 0.0, %v1655
        %v1657 = vpop.f32.mrf.mxu0
        %1658 = vmatprep.mubr.f32.mxu0 0.0
        %1659 = vmatmul.mubr.f32.gmra.mxu0 %v1541
        %v1660 = vpop.f32.mrf.mxu0
        %v1661 = vadd.f32 0.0, %v1660
        %v1662 = vpop.f32.mrf.mxu0
        %1663 = vdwg.mxu0
        %v1664 = vadd.f32 %v1526, %v1626
        %v1665 = vadd.f32 %v1527, %v1631
        %v1666 = vadd.f32 %v1528, %v1636
        %v1667 = vadd.f32 %v1529, %v1641
        %v1668 = vadd.f32 %v1530, %v1646
        %v1669 = vadd.f32 %v1531, %v1651
        %v1670 = vadd.f32 %v1532, %v1656
        %v1671 = vadd.f32 %v1533, %v1661
        %v1672 = vld [vmem:[%s5] sm:$0x1]
        %v1674 = vlaneseq
        %v1675 = vshrl.u32 %v1674, 7
        %v1676 = vsub.s32 0, %v1675
        %v1677 = vrot.slane %v1672, %v1676
        %v1679 = vadd.f32 %v1664, %v1677
        %v1680 = vadd.f32 %v1665, %v1677
        %v1681 = vadd.f32 %v1666, %v1677
        %v1682 = vadd.f32 %v1667, %v1677
        %v1683 = vadd.f32 %v1668, %v1677
        %v1684 = vadd.f32 %v1669, %v1677
        %v1685 = vadd.f32 %v1670, %v1677
        %v1686 = vadd.f32 %v1671, %v1677
        %v1687 = vmax.f32 %v1679, 0.0
        %v1688 = vmax.f32 %v1680, 0.0
        %v1689 = vmax.f32 %v1681, 0.0
        %v1690 = vmax.f32 %v1682, 0.0
        %v1691 = vmax.f32 %v1683, 0.0
        %v1692 = vmax.f32 %v1684, 0.0
        %v1693 = vmax.f32 %v1685, 0.0
        %v1694 = vmax.f32 %v1686, 0.0
        %s1695 = sld [smem:[#allocation4 + %s41]]
        %s1696 = ssub.s32 %s41, 1
        %p1697 = scmp.gt.s32.totalorder %s1696, 0
        %s1698 = scalar_select %p1697, %s1696, 0
        %s1699 = sld [smem:[#allocation4 + %s1698]]
        %s1700 = sadd.s32 %s41, 1
        %p1701 = scmp.lt.s32.totalorder %s1700, 4
        %s1702 = scalar_select %p1701, %s1700, 4
        %s1703 = sld [smem:[#allocation4 + %s1702]]
        %p1704 = scmp.eq.s32.totalorder %s41, 0
        %p1705 = scmp.ne.s32.totalorder %s1699, %s1695
        %p1706 = por %p1704, %p1705
        %p1707 = scmp.eq.s32.totalorder %s41, 4
        %p1708 = scmp.ne.s32.totalorder %s1703, %s1695
        %p1709 = por %p1707, %p1708
        // Predicated region
        $region41: #{tpu_custom_call.1} parent=31 // pred_check
          %p1710 = pneg %p1706
        $region42: #{tpu_custom_call.1} parent=31 // pred_check_branch
          %1712 = sbr.rel (%p1710) target = $region44
        $region43: #{tpu_custom_call.1} parent=31 // pred_region
          %1713 = vst [vmem:[%s241] sm:$0xff] %v1687
          %1714 = vst [vmem:[%s241 + $0x8] sm:$0xff] %v1688
          %1715 = vst [vmem:[%s241 + $0x10] sm:$0xff] %v1689
          %1716 = vst [vmem:[%s241 + $0x18] sm:$0xff] %v1690
          %1717 = vst [vmem:[%s241 + $0x20] sm:$0xff] %v1691
          %1718 = vst [vmem:[%s241 + $0x28] sm:$0xff] %v1692
          %1719 = vst [vmem:[%s241 + $0x30] sm:$0xff] %v1693
          %1720 = vst [vmem:[%s241 + $0x38] sm:$0xff] %v1694
        $region44: #{tpu_custom_call.1} parent=31 // pred_fallthru
          _
        %p1721 = pneg %p1706
        // Predicated region
        $region45: #{tpu_custom_call.1} parent=31 // pred_check
          _
        $region46: #{tpu_custom_call.1} parent=31 // pred_check_branch
          %1723 = sbr.rel (%p1706) target = $region48
        $region47: #{tpu_custom_call.1} parent=31 // pred_region
          %v1724 = vld [vmem:[%s241] sm:$0xff]
          %v1725 = vld [vmem:[%s241 + $0x8] sm:$0xff]
          %v1726 = vld [vmem:[%s241 + $0x10] sm:$0xff]
          %v1727 = vld [vmem:[%s241 + $0x18] sm:$0xff]
          %v1728 = vld [vmem:[%s241 + $0x20] sm:$0xff]
          %v1729 = vld [vmem:[%s241 + $0x28] sm:$0xff]
          %v1730 = vld [vmem:[%s241 + $0x30] sm:$0xff]
          %v1731 = vld [vmem:[%s241 + $0x38] sm:$0xff]
          %v1732 = vadd.f32 %v1724, %v1687
          %v1733 = vadd.f32 %v1725, %v1688
          %v1734 = vadd.f32 %v1726, %v1689
          %v1735 = vadd.f32 %v1727, %v1690
          %v1736 = vadd.f32 %v1728, %v1691
          %v1737 = vadd.f32 %v1729, %v1692
          %v1738 = vadd.f32 %v1730, %v1693
          %v1739 = vadd.f32 %v1731, %v1694
          %1740 = vst [vmem:[%s241] sm:$0xff] %v1732
          %1741 = vst [vmem:[%s241 + $0x8] sm:$0xff] %v1733
          %1742 = vst [vmem:[%s241 + $0x10] sm:$0xff] %v1734
          %1743 = vst [vmem:[%s241 + $0x18] sm:$0xff] %v1735
          %1744 = vst [vmem:[%s241 + $0x20] sm:$0xff] %v1736
          %1745 = vst [vmem:[%s241 + $0x28] sm:$0xff] %v1737
          %1746 = vst [vmem:[%s241 + $0x30] sm:$0xff] %v1738
          %1747 = vst [vmem:[%s241 + $0x38] sm:$0xff] %v1739
        $region48: #{tpu_custom_call.1} parent=31 // pred_fallthru
          _
        // Predicated region
        $region49: #{tpu_custom_call.1} parent=31 // pred_check
          %p1748 = pneg %p1709
        $region50: #{tpu_custom_call.1} parent=31 // pred_check_branch
          %1750 = sbr.rel (%p1748) target = $region52
        $region51: #{tpu_custom_call.1} parent=31 // pred_region
          %v1751 = vld [vmem:[%s241] sm:$0xff]
          %v1752 = vld [vmem:[%s241 + $0x8] sm:$0xff]
          %v1753 = vld [vmem:[%s241 + $0x10] sm:$0xff]
          %v1754 = vld [vmem:[%s241 + $0x18] sm:$0xff]
          %v1755 = vld [vmem:[%s241 + $0x20] sm:$0xff]
          %v1756 = vld [vmem:[%s241 + $0x28] sm:$0xff]
          %v1757 = vld [vmem:[%s241 + $0x30] sm:$0xff]
          %v1758 = vld [vmem:[%s241 + $0x38] sm:$0xff]
          %s1759 = sld [smem:[#allocation5 + %s41]]
          %s1760 = scvt.s32.f32 %s1759
          %v1761 = vstv %s1760
          %v1762 = vrcp.pop %v1761
          %s1763 = vtos %v1762
          %v1764 = vstv %s1763
          %v1765 = vmul.f32 %v1751, %v1764
          %v1766 = vmul.f32 %v1752, %v1764
          %v1767 = vmul.f32 %v1753, %v1764
          %v1768 = vmul.f32 %v1754, %v1764
          %v1769 = vmul.f32 %v1755, %v1764
          %v1770 = vmul.f32 %v1756, %v1764
          %v1771 = vmul.f32 %v1757, %v1764
          %v1772 = vmul.f32 %v1758, %v1764
          %1773 = vst [vmem:[%s241] sm:$0xff] %v1765
          %1774 = vst [vmem:[%s241 + $0x8] sm:$0xff] %v1766
          %1775 = vst [vmem:[%s241 + $0x10] sm:$0xff] %v1767
          %1776 = vst [vmem:[%s241 + $0x18] sm:$0xff] %v1768
          %1777 = vst [vmem:[%s241 + $0x20] sm:$0xff] %v1769
          %1778 = vst [vmem:[%s241 + $0x28] sm:$0xff] %v1770
          %1779 = vst [vmem:[%s241 + $0x30] sm:$0xff] %v1771
          %1780 = vst [vmem:[%s241 + $0x38] sm:$0xff] %v1772
        $region52: #{tpu_custom_call.1} parent=31 // pred_fallthru
          _
        %s1781 = sand.u32 %s132, 1
        %s1782 = scalar_lea.sflag [#allocation8], %s1781
        %s1783 = sand.u32 %s132, 1
        %s1784 = smul.addr %s1783, 64
        %s1785 = scalar_lea.vmem [#allocation11], %s1784
        // Predicated region
        $region53: #{tpu_custom_call.1} parent=31 // pred_check
          %p1786 = pneg %p142
        $region54: #{tpu_custom_call.1} parent=31 // pred_check_branch
          %1788 = sbr.rel (%p1786) target = $region56
        $region55: #{tpu_custom_call.1} parent=31 // pred_region
          %s1789 = sld [smem:[#allocation4 + %s41]]
          %s1791 = ssub.s32 1024, 1024
          %1792 = vsyncadd %s1782, %s1791
          %s1793 = smul.addr %s1789, 8
          %s1794 = smul.addr %s40, 24
          %s1795 = sadd.s32 %s1793, %s1794
          %s1796 = smul.addr %s1795, 128
          %s1797 = scalar_lea.hbm %s6, %s1796
          %s1798 = sshll.u32 %s1785, 4
          %s1799 = int_to_ptr.vmem [resolvable:$true] %s1798
          %1804 = dma.vmem_to_hbm [thread:$0]  %s1799, 1024, %s1797, %s1782, 128, 128, 8
        $region56: #{tpu_custom_call.1} parent=31 // pred_fallthru
          _
      $region32: #{tpu_custom_call.1} parent=5 // pred_fallthru
        _
      %p1805 = scmp.le.s32.totalorder 2, %s31
      // Predicated region
      $region57: #{tpu_custom_call.1} parent=5 // pred_check
        %p1806 = pneg %p1805
      $region58: #{tpu_custom_call.1} parent=5 // pred_check_branch
        %1808 = sbr.rel (%p1806) target = $region60
      $region59: #{tpu_custom_call.1} parent=5 // pred_region
        %s1809 = ssub.s32 %s31, 2
        // Predicated region
        $region61: #{tpu_custom_call.1} parent=59 // pred_check
          %p1810 = pneg %p148
        $region62: #{tpu_custom_call.1} parent=59 // pred_check_branch
          %1812 = sbr.rel (%p1810) target = $region64
        $region63: #{tpu_custom_call.1} parent=59 // pred_region
          %s1813 = sand.u32 %s133, 1
          %s1814 = scalar_lea.sflag [#allocation8], %s1813
          %s1815 = sand.u32 %s133, 1
          %s1816 = smul.addr %s1815, 64
          %s1817 = scalar_lea.vmem [#allocation11], %s1816
          %1818 = dma.done %s1814, 1024
        $region64: #{tpu_custom_call.1} parent=59 // pred_fallthru
          _
      $region60: #{tpu_custom_call.1} parent=5 // pred_fallthru
        _
    $region6: #{tpu_custom_call.1} parent=1 // loop_footer
      %s35 = sadd.s32 1, %s31
    $region7: #{tpu_custom_call.1} parent=1 // loop_footer_branch
      %30 = sbr.rel target = $region3
    $region8: #{tpu_custom_call.1} parent=1 // loop_exit
      _
    %1819 = vsyncpa [#allocation7], 1
    %s1820 = scalar_lea.sflag [#allocation7], 1
    %1821 = vsyncpa %s1820, 1
    %1822 = vsyncpa [#allocation10], 1
    %1823 = vsyncpa [#allocation8], 1
    %s1824 = scalar_lea.sflag [#allocation8], 1
    %1825 = vsyncpa %s1824, 1

</llo_original>
